<compile_context>
chip_gen: v7x
topology: tpu7x:2x2x1
jax: 0.10.0
libtpu: 0.0.40
codegen_flags: <defaults>
</compile_context>

<pallas_src>
import functools

import jax
import jax.numpy as jnp
from jax.experimental import pallas as pl
from jax.experimental.pallas import tpu as pltpu


def decoder_stack_kernel(x_ref,
                         wqkv_ref, wo_ref, w1_ref, w2_ref,
                         vece_ref, b1_ref,
                         o_ref,
                         *, num_heads, matmul_dtype):
    """One (batch_tile, layer) grid step of the fused decoder stack."""
    l = pl.program_id(1)

    # Layer 0: seed the resident activation block from the input.
    @pl.when(l == 0)
    def _():
        o_ref[...] = x_ref[...]

    bb, S, E = o_ref.shape
    H = num_heads
    dh = E // H
    scale = float(dh) ** -0.5
    md = matmul_dtype

    def mm(a, w):
        return jnp.dot(a.astype(md), w.astype(md),
                       preferred_element_type=jnp.float32)

    x = o_ref[...].astype(jnp.float32)            # previous layer's output, (bb, S, E)
    x2 = x.reshape(bb * S, E)

    vecs = vece_ref[0]                            # (9, E) packed per-layer f32 vectors
    bq, bk, bv, bo = vecs[0:1], vecs[1:2], vecs[2:3], vecs[3:4]
    g1, be1 = vecs[4:5], vecs[5:6]
    b2, g2, be2 = vecs[6:7], vecs[7:8], vecs[8:9]
    b1 = b1_ref[0]                                # (1, F) f32

    # ---- multi-head self-attention (packed QKV projection: one MXU matmul) ----
    # TODO(synk): mask=None path only (no causal mask), matching the reference call.
    qkv = mm(x2, wqkv_ref[0])                     # (bb*S, 3E), f32 accumulation
    # Fold 1/sqrt(dh) into q here (cheaper than scaling the (bb,S,S) scores).
    q = ((qkv[:, 0:E] + bq) * scale).reshape(bb, S, E)
    k = (qkv[:, E:2 * E] + bk).reshape(bb, S, E)
    v = (qkv[:, 2 * E:3 * E] + bv).reshape(bb, S, E)

    wo_full = wo_ref[0]                           # (E, E) bf16/f32 weight
    attn = jnp.zeros((bb * S, E), jnp.float32)
    for h in range(H):                            # static unroll over heads
        lo = h * dh
        qh = q[:, :, lo:lo + dh].astype(md)
        kh = k[:, :, lo:lo + dh].astype(md)
        vh = v[:, :, lo:lo + dh].astype(md)
        s = jnp.einsum('bqd,bkd->bqk', qh, kh,
                       preferred_element_type=jnp.float32)           # (bb, S, S)
        s = s - jnp.max(s, axis=-1, keepdims=True)
        p = jnp.exp(s)
        p = p * pl.reciprocal(jnp.sum(p, axis=-1, keepdims=True), approx=True)
        ctx = jnp.einsum('bqk,bkd->bqd', p.astype(md), vh,
                         preferred_element_type=jnp.float32)          # (bb, S, dh)
        # Absorb head recombination into the output projection (no concat).
        wo_h = wo_full[lo:lo + dh, :]                                 # (dh, E)
        attn = attn + jnp.dot(ctx.reshape(bb * S, dh).astype(md), wo_h.astype(md),
                              preferred_element_type=jnp.float32)
    attn = attn + bo

    # ---- residual + LayerNorm 1 (center first, then mean((x-mu)^2)) ----
    y = x2 + attn
    mu = jnp.mean(y, axis=-1, keepdims=True)
    yc = y - mu
    var = jnp.mean(yc * yc, axis=-1, keepdims=True)
    y = yc * jax.lax.rsqrt(var + 1e-5) * g1 + be1

    # ---- feed-forward: Linear -> ReLU -> Linear (dropout p=0 -> identity) ----
    h1 = jnp.maximum(mm(y, w1_ref[0]) + b1, 0.0)
    ff = mm(h1, w2_ref[0]) + b2

    # ---- residual + LayerNorm 2 ----
    z = y + ff
    mu2 = jnp.mean(z, axis=-1, keepdims=True)
    zc = z - mu2
    var2 = jnp.mean(zc * zc, axis=-1, keepdims=True)
    z = zc * jax.lax.rsqrt(var2 + 1e-5) * g2 + be2

    o_ref[...] = z.reshape(bb, S, E)


def stack_layer_params(layer_params, weight_dtype=jnp.bfloat16):
    """Stack per-layer params into (L, ...) arrays; pack QKV weights and tiny vectors.

    Big matmul weights are stored in `weight_dtype` (bf16 default: MXU-native, halves
    weight HBM/VMEM). Biases and LayerNorm params stay f32.
    """
    wqkv = jnp.stack([jnp.concatenate([p["wq"], p["wk"], p["wv"]], axis=1)
                      for p in layer_params]).astype(weight_dtype)   # (L, E, 3E)
    wo = jnp.stack([p["wo"] for p in layer_params]).astype(weight_dtype)   # (L, E, E)
    w1 = jnp.stack([p["w1"] for p in layer_params]).astype(weight_dtype)   # (L, E, F)
    w2 = jnp.stack([p["w2"] for p in layer_params]).astype(weight_dtype)   # (L, F, E)
    vec_e = jnp.stack([jnp.stack([p["bq"], p["bk"], p["bv"], p["bo"],
                                  p["g1"], p["be1"], p["b2"], p["g2"], p["be2"]])
                       for p in layer_params]).astype(jnp.float32)   # (L, 9, E)
    b1 = jnp.stack([p["b1"][None, :] for p in layer_params]).astype(jnp.float32)  # (L,1,F)
    return wqkv, wo, w1, w2, vec_e, b1


def multi_layered_decoder_forward(x, layer_params, num_heads, *,
                                  batch_block=None,
                                  batch_tiles=None,
                                  matmul_dtype=jnp.bfloat16,
                                  vmem_limit_bytes=None):
    """Fused MultiLayeredDecoder forward: one pallas_call for the whole layer stack."""
    B, S, E = x.shape
    L = len(layer_params)
    F = layer_params[0]["w1"].shape[1]

    # Default bt=1: whole batch in one tile (single-TC v5e/v6e stream each layer's
    # weights from HBM exactly once; largest matmul M). On v7x pass batch_tiles=2 so
    # the "parallel" batch axis maps onto the 2 TensorCores without over-fragmenting.
    if batch_block is None:
        bt = max(1, int(batch_tiles) if batch_tiles else 1)
        while bt > 1 and B % bt != 0:
            bt -= 1
        batch_block = B // bt
    assert B % batch_block == 0
    bt = B // batch_block

    wqkv, wo, w1, w2, vec_e, b1 = stack_layer_params(layer_params,
                                                     weight_dtype=matmul_dtype)

    kernel = functools.partial(decoder_stack_kernel,
                               num_heads=num_heads, matmul_dtype=matmul_dtype)

    # Explicit scoped-VMEM limit from the real block sizes (defaults 16/32 MiB are far
    # below physical); clamped to 64 MiB so it stays valid on v7x.
    wbytes = jnp.dtype(matmul_dtype).itemsize
    act_blk = 4 * batch_block * S * E
    w_blk = wbytes * (3 * E * E + E * E + E * F + F * E)
    small_blk = 4 * (9 * E + F)
    interm = 4 * batch_block * S * (8 * E + F) + 4 * batch_block * 2 * S * S
    est = 4 * act_blk + 2 * (w_blk + small_blk) + interm
    if vmem_limit_bytes is None:
        vmem_limit_bytes = int(min(max(est * 3 // 2, 32 << 20), 64 << 20))

    flops = int(2 * L * B * S * (4 * E * E + 2 * E * F + 2 * S * E))
    transcendentals = int(L * B * (num_heads * S * S + 2 * S))
    param_bytes = wbytes * (4 * E * E + 2 * E * F) + 4 * (9 * E + F)
    bytes_accessed = int(4 * 2 * B * S * E + bt * L * param_bytes)

    return pl.pallas_call(
        kernel,
        out_shape=jax.ShapeDtypeStruct((B, S, E), jnp.float32),
        grid_spec=pltpu.PrefetchScalarGridSpec(
            num_scalar_prefetch=0,
            grid=(bt, L),                                            # layer axis innermost
            in_specs=[
                pl.BlockSpec((batch_block, S, E), lambda b, l: (b, 0, 0)),  # x (read at l==0)
                pl.BlockSpec((1, E, 3 * E), lambda b, l: (l, 0, 0)),        # packed Wq|Wk|Wv
                pl.BlockSpec((1, E, E), lambda b, l: (l, 0, 0)),            # Wo
                pl.BlockSpec((1, E, F), lambda b, l: (l, 0, 0)),            # FFN W1
                pl.BlockSpec((1, F, E), lambda b, l: (l, 0, 0)),            # FFN W2
                pl.BlockSpec((1, 9, E), lambda b, l: (l, 0, 0)),            # packed E-sized vecs
                pl.BlockSpec((1, 1, F), lambda b, l: (l, 0, 0)),            # FFN b1
            ],
            out_specs=pl.BlockSpec((batch_block, S, E), lambda b, l: (b, 0, 0)),
        ),
        compiler_params=pltpu.CompilerParams(
            dimension_semantics=("parallel", "arbitrary"),
            vmem_limit_bytes=vmem_limit_bytes),
        cost_estimate=pl.CostEstimate(flops=flops,
                                      transcendentals=transcendentals,
                                      bytes_accessed=bytes_accessed),
    )(x, wqkv, wo, w1, w2, vec_e, b1)


def init_layer_params(key, embed_dim, feed_forward_dim):
    ks = jax.random.split(key, 6)
    s_e = 1.0 / jnp.sqrt(jnp.float32(embed_dim))
    s_f = 1.0 / jnp.sqrt(jnp.float32(feed_forward_dim))
    E, F = embed_dim, feed_forward_dim
    return {
        "wq": jax.random.normal(ks[0], (E, E), jnp.float32) * s_e,
        "bq": jnp.zeros((E,), jnp.float32),
        "wk": jax.random.normal(ks[1], (E, E), jnp.float32) * s_e,
        "bk": jnp.zeros((E,), jnp.float32),
        "wv": jax.random.normal(ks[2], (E, E), jnp.float32) * s_e,
        "bv": jnp.zeros((E,), jnp.float32),
        "wo": jax.random.normal(ks[3], (E, E), jnp.float32) * s_e,
        "bo": jnp.zeros((E,), jnp.float32),
        "g1": jnp.ones((E,), jnp.float32),
        "be1": jnp.zeros((E,), jnp.float32),
        "w1": jax.random.normal(ks[4], (E, F), jnp.float32) * s_e,
        "b1": jnp.zeros((F,), jnp.float32),
        "w2": jax.random.normal(ks[5], (F, E), jnp.float32) * s_f,
        "b2": jnp.zeros((E,), jnp.float32),
        "g2": jnp.ones((E,), jnp.float32),
        "be2": jnp.zeros((E,), jnp.float32),
    }


def reference_forward(x, layer_params, num_heads, matmul_dtype=jnp.bfloat16):
    """Pure-JAX reference with matching matmul precision (low-precision in, f32 accum)."""
    B, S, E = x.shape
    H = num_heads
    dh = E // H
    md = matmul_dtype

    def mm(a, w):
        return jnp.dot(a.astype(md), w.astype(md), preferred_element_type=jnp.float32)

    for p in layer_params:
        x2 = x.reshape(B * S, E)
        q = (mm(x2, p["wq"]) + p["bq"]).reshape(B, S, H, dh).transpose(0, 2, 1, 3)
        k = (mm(x2, p["wk"]) + p["bk"]).reshape(B, S, H, dh).transpose(0, 2, 1, 3)
        v = (mm(x2, p["wv"]) + p["bv"]).reshape(B, S, H, dh).transpose(0, 2, 1, 3)
        s = jnp.einsum('bhqd,bhkd->bhqk',
                       (q / jnp.sqrt(jnp.float32(dh))).astype(md), k.astype(md),
                       preferred_element_type=jnp.float32)
        a = jax.nn.softmax(s, axis=-1)
        ctx = jnp.einsum('bhqk,bhkd->bhqd', a.astype(md), v.astype(md),
                         preferred_element_type=jnp.float32)
        ctx = ctx.transpose(0, 2, 1, 3).reshape(B * S, E)
        attn = mm(ctx, p["wo"]) + p["bo"]
        y = x2 + attn
        y = (y - y.mean(-1, keepdims=True)) * jax.lax.rsqrt(
            y.var(-1, keepdims=True) + 1e-5) * p["g1"] + p["be1"]
        h1 = jnp.maximum(mm(y, p["w1"]) + p["b1"], 0.0)
        ff = mm(h1, p["w2"]) + p["b2"]
        z = y + ff
        z = (z - z.mean(-1, keepdims=True)) * jax.lax.rsqrt(
            z.var(-1, keepdims=True) + 1e-5) * p["g2"] + p["be2"]
        x = z.reshape(B, S, E)
    return x


if __name__ == "__main__":
    num_layers = 2
    batch = 2
    context_size = 8          # S
    embed_dim = 32            # E
    num_attention_heads = 4
    feed_forward_dim = 64     # F

    root = jax.random.PRNGKey(0)
    kx, kp = jax.random.split(root)
    x = jax.random.normal(kx, (batch, context_size, embed_dim), jnp.float32)

    layer_keys = jax.random.split(kp, num_layers)
    layer_params = [init_layer_params(k, embed_dim, feed_forward_dim)
                    for k in layer_keys]

    out = multi_layered_decoder_forward(x, layer_params, num_attention_heads)
    out = jax.block_until_ready(out)

    assert out.shape == (batch, context_size, embed_dim)
    assert bool(jnp.all(jnp.isfinite(out)))

    ref = reference_forward(x, layer_params, num_attention_heads)
    err = float(jnp.max(jnp.abs(out - ref)))
    assert err < 2e-2, err

    print("KERNEL_OK")
</pallas_src>

<mosaic_0001>
module attributes {stable_mosaic.version = 11 : i64} {
  func.func @decoder_stack_kernel(%arg0: i32, %arg1: i32, %arg2: memref<2x8x32xf32, #tpu.memory_space<vmem>>, %arg3: memref<1x32x96xbf16, #tpu.memory_space<vmem>>, %arg4: memref<1x32x32xbf16, #tpu.memory_space<vmem>>, %arg5: memref<1x32x64xbf16, #tpu.memory_space<vmem>>, %arg6: memref<1x64x32xbf16, #tpu.memory_space<vmem>>, %arg7: memref<1x9x32xf32, #tpu.memory_space<vmem>>, %arg8: memref<1x1x64xf32, #tpu.memory_space<vmem>>, %arg9: memref<2x8x32xf32, #tpu.memory_space<vmem>>) attributes {dimension_semantics = [#tpu.dimension_semantics<parallel>, #tpu.dimension_semantics<arbitrary>], iteration_bounds = array<i64: 1, 2>, scalar_prefetch = 0 : i64, scratch_operands = 0 : i64, tpu.core_type = #tpu.core_type<tc>, window_params = [{transform_indices = @transform_0, window_bounds = array<i64: 2, 8, 32>}, {transform_indices = @transform_1, window_bounds = array<i64: 1, 32, 96>}, {transform_indices = @transform_2, window_bounds = array<i64: 1, 32, 32>}, {transform_indices = @transform_3, window_bounds = array<i64: 1, 32, 64>}, {transform_indices = @transform_4, window_bounds = array<i64: 1, 64, 32>}, {transform_indices = @transform_5, window_bounds = array<i64: 1, 9, 32>}, {transform_indices = @transform_6, window_bounds = array<i64: 1, 1, 64>}, {transform_indices = @transform_7, window_bounds = array<i64: 2, 8, 32>}]} {
    %c0_i32 = arith.constant 0 : i32
    %0 = arith.cmpi eq, %arg1, %c0_i32 : i32
    %1 = arith.extui %0 : i1 to i32
    %c0_i32_0 = arith.constant 0 : i32
    %2 = arith.cmpi ne, %1, %c0_i32_0 : i32
    scf.if %2 {
      %c0_59 = arith.constant 0 : index
      %c0_60 = arith.constant 0 : index
      %c0_61 = arith.constant 0 : index
      %195 = vector.load %arg2[%c0_59, %c0_60, %c0_61] : memref<2x8x32xf32, #tpu.memory_space<vmem>>, vector<2x8x32xf32>
      %c0_62 = arith.constant 0 : index
      %c0_63 = arith.constant 0 : index
      %c0_64 = arith.constant 0 : index
      %196 = vector.load %arg9[%c0_62, %c0_63, %c0_64] : memref<2x8x32xf32, #tpu.memory_space<vmem>>, vector<2x8x32xf32>
      tpu.vector_store %arg9[%c0_62, %c0_63, %c0_64], %195 {strides = array<i32>} : memref<2x8x32xf32, #tpu.memory_space<vmem>>, vector<2x8x32xf32>,
    } else {
    }
    %c0 = arith.constant 0 : index
    %c0_1 = arith.constant 0 : index
    %c0_2 = arith.constant 0 : index
    %3 = vector.load %arg9[%c0, %c0_1, %c0_2] : memref<2x8x32xf32, #tpu.memory_space<vmem>>, vector<2x8x32xf32>
    %4 = vector.shape_cast %3 : vector<2x8x32xf32> to vector<16x32xf32>
    %c0_3 = arith.constant 0 : index
    %c0_4 = arith.constant 0 : index
    %c0_5 = arith.constant 0 : index
    %5 = vector.load %arg7[%c0_3, %c0_4, %c0_5] : memref<1x9x32xf32, #tpu.memory_space<vmem>>, vector<1x9x32xf32>
    %6 = vector.shape_cast %5 : vector<1x9x32xf32> to vector<9x32xf32>
    %7 = vector.extract_strided_slice %6 {offsets = [0, 0], sizes = [1, 32], strides = [1, 1]} : vector<9x32xf32> to vector<1x32xf32>
    %8 = vector.extract_strided_slice %6 {offsets = [1, 0], sizes = [1, 32], strides = [1, 1]} : vector<9x32xf32> to vector<1x32xf32>
    %9 = vector.extract_strided_slice %6 {offsets = [2, 0], sizes = [1, 32], strides = [1, 1]} : vector<9x32xf32> to vector<1x32xf32>
    %10 = vector.extract_strided_slice %6 {offsets = [3, 0], sizes = [1, 32], strides = [1, 1]} : vector<9x32xf32> to vector<1x32xf32>
    %11 = vector.extract_strided_slice %6 {offsets = [4, 0], sizes = [1, 32], strides = [1, 1]} : vector<9x32xf32> to vector<1x32xf32>
    %12 = vector.extract_strided_slice %6 {offsets = [5, 0], sizes = [1, 32], strides = [1, 1]} : vector<9x32xf32> to vector<1x32xf32>
    %13 = vector.extract_strided_slice %6 {offsets = [6, 0], sizes = [1, 32], strides = [1, 1]} : vector<9x32xf32> to vector<1x32xf32>
    %14 = vector.extract_strided_slice %6 {offsets = [7, 0], sizes = [1, 32], strides = [1, 1]} : vector<9x32xf32> to vector<1x32xf32>
    %15 = vector.extract_strided_slice %6 {offsets = [8, 0], sizes = [1, 32], strides = [1, 1]} : vector<9x32xf32> to vector<1x32xf32>
    %c0_6 = arith.constant 0 : index
    %c0_7 = arith.constant 0 : index
    %c0_8 = arith.constant 0 : index
    %16 = vector.load %arg8[%c0_6, %c0_7, %c0_8] : memref<1x1x64xf32, #tpu.memory_space<vmem>>, vector<1x1x64xf32>
    %17 = vector.shape_cast %16 : vector<1x1x64xf32> to vector<1x64xf32>
    %c0_9 = arith.constant 0 : index
    %c0_10 = arith.constant 0 : index
    %c0_11 = arith.constant 0 : index
    %18 = vector.load %arg3[%c0_9, %c0_10, %c0_11] : memref<1x32x96xbf16, #tpu.memory_space<vmem>>, vector<1x32x96xbf16>
    %19 = vector.shape_cast %18 : vector<1x32x96xbf16> to vector<32x96xbf16>
    %20 = arith.truncf %4 : vector<16x32xf32> to vector<16x32xbf16>
    %cst = arith.constant dense<0.000000e+00> : vector<16x96xf32>
    %21 = tpu.matmul %20, %19, %cst {dimension_numbers = #tpu.dot_dimension_numbers<[1], [0], [0], [1], [0, 0, 1, 1], [], []>} : vector<16x32xbf16>, vector<32x96xbf16>, vector<16x96xf32> -> vector<16x96xf32>
    %22 = vector.extract_strided_slice %21 {offsets = [0, 0], sizes = [16, 32], strides = [1, 1]} : vector<16x96xf32> to vector<16x32xf32>
    %23 = vector.broadcast %7 : vector<1x32xf32> to vector<16x32xf32>
    %24 = arith.addf %22, %23 : vector<16x32xf32>
    %cst_12 = arith.constant 0.353553385 : f32
    %25 = vector.broadcast %cst_12 : f32 to vector<16x32xf32>
    %26 = arith.mulf %24, %25 : vector<16x32xf32>
    %27 = vector.shape_cast %26 : vector<16x32xf32> to vector<2x8x32xf32>
    %28 = vector.extract_strided_slice %21 {offsets = [0, 32], sizes = [16, 32], strides = [1, 1]} : vector<16x96xf32> to vector<16x32xf32>
    %29 = vector.broadcast %8 : vector<1x32xf32> to vector<16x32xf32>
    %30 = arith.addf %28, %29 : vector<16x32xf32>
    %31 = vector.shape_cast %30 : vector<16x32xf32> to vector<2x8x32xf32>
    %32 = vector.extract_strided_slice %21 {offsets = [0, 64], sizes = [16, 32], strides = [1, 1]} : vector<16x96xf32> to vector<16x32xf32>
    %33 = vector.broadcast %9 : vector<1x32xf32> to vector<16x32xf32>
    %34 = arith.addf %32, %33 : vector<16x32xf32>
    %35 = vector.shape_cast %34 : vector<16x32xf32> to vector<2x8x32xf32>
    %c0_13 = arith.constant 0 : index
    %c0_14 = arith.constant 0 : index
    %c0_15 = arith.constant 0 : index
    %36 = vector.load %arg4[%c0_13, %c0_14, %c0_15] : memref<1x32x32xbf16, #tpu.memory_space<vmem>>, vector<1x32x32xbf16>
    %37 = vector.shape_cast %36 : vector<1x32x32xbf16> to vector<32x32xbf16>
    %cst_16 = arith.constant 0.000000e+00 : f32
    %38 = vector.broadcast %cst_16 : f32 to vector<16x32xf32>
    %39 = vector.extract_strided_slice %27 {offsets = [0, 0, 0], sizes = [2, 8, 8], strides = [1, 1, 1]} : vector<2x8x32xf32> to vector<2x8x8xf32>
    %40 = arith.truncf %39 : vector<2x8x8xf32> to vector<2x8x8xbf16>
    %41 = vector.extract_strided_slice %31 {offsets = [0, 0, 0], sizes = [2, 8, 8], strides = [1, 1, 1]} : vector<2x8x32xf32> to vector<2x8x8xf32>
    %42 = arith.truncf %41 : vector<2x8x8xf32> to vector<2x8x8xbf16>
    %43 = vector.extract_strided_slice %35 {offsets = [0, 0, 0], sizes = [2, 8, 8], strides = [1, 1, 1]} : vector<2x8x32xf32> to vector<2x8x8xf32>
    %44 = arith.truncf %43 : vector<2x8x8xf32> to vector<2x8x8xbf16>
    "tpu.trace_start"() <{level = 10 : i32, message = "bqd,bkd->bqk"}> : () -> ()
    %cst_17 = arith.constant dense<0.000000e+00> : vector<2x8x8xf32>
    %45 = tpu.matmul %40, %42, %cst_17 {dimension_numbers = #tpu.dot_dimension_numbers<[2], [2], [1], [1], [0, 0, 0, 1, 1, 1], [0], [0]>} : vector<2x8x8xbf16>, vector<2x8x8xbf16>, vector<2x8x8xf32> -> vector<2x8x8xf32>
    "tpu.trace_stop"() : () -> ()
    %cst_18 = arith.constant dense<0xFF800000> : vector<2x8xf32>
    %46 = vector.multi_reduction <maximumf>, %45, %cst_18 [2] : vector<2x8x8xf32> to vector<2x8xf32>
    %47 = vector.shape_cast %46 : vector<2x8xf32> to vector<2x8x1xf32>
    %48 = vector.broadcast %47 : vector<2x8x1xf32> to vector<2x8x8xf32>
    %49 = arith.subf %45, %48 : vector<2x8x8xf32>
    %50 = math.exp %49 : vector<2x8x8xf32>
    %cst_19 = arith.constant dense<0.000000e+00> : vector<2x8xf32>
    %51 = vector.multi_reduction <add>, %50, %cst_19 [2] : vector<2x8x8xf32> to vector<2x8xf32>
    %52 = vector.shape_cast %51 : vector<2x8xf32> to vector<2x8x1xf32>
    %53 = tpu.reciprocal %52 {approx = true} : vector<2x8x1xf32> -> vector<2x8x1xf32>
    %54 = vector.broadcast %53 : vector<2x8x1xf32> to vector<2x8x8xf32>
    %55 = arith.mulf %50, %54 : vector<2x8x8xf32>
    %56 = arith.truncf %55 : vector<2x8x8xf32> to vector<2x8x8xbf16>
    "tpu.trace_start"() <{level = 10 : i32, message = "bqk,bkd->bqd"}> : () -> ()
    %cst_20 = arith.constant dense<0.000000e+00> : vector<2x8x8xf32>
    %57 = tpu.matmul %56, %44, %cst_20 {dimension_numbers = #tpu.dot_dimension_numbers<[2], [1], [1], [2], [0, 0, 0, 1, 1, 2], [0], [0]>} : vector<2x8x8xbf16>, vector<2x8x8xbf16>, vector<2x8x8xf32> -> vector<2x8x8xf32>
    "tpu.trace_stop"() : () -> ()
    %58 = vector.extract_strided_slice %37 {offsets = [0, 0], sizes = [8, 32], strides = [1, 1]} : vector<32x32xbf16> to vector<8x32xbf16>
    %59 = vector.shape_cast %57 : vector<2x8x8xf32> to vector<16x8xf32>
    %60 = arith.truncf %59 : vector<16x8xf32> to vector<16x8xbf16>
    %cst_21 = arith.constant dense<0.000000e+00> : vector<16x32xf32>
    %61 = tpu.matmul %60, %58, %cst_21 {dimension_numbers = #tpu.dot_dimension_numbers<[1], [0], [0], [1], [0, 0, 1, 1], [], []>} : vector<16x8xbf16>, vector<8x32xbf16>, vector<16x32xf32> -> vector<16x32xf32>
    %62 = arith.addf %38, %61 : vector<16x32xf32>
    %63 = vector.extract_strided_slice %27 {offsets = [0, 0, 8], sizes = [2, 8, 8], strides = [1, 1, 1]} : vector<2x8x32xf32> to vector<2x8x8xf32>
    %64 = arith.truncf %63 : vector<2x8x8xf32> to vector<2x8x8xbf16>
    %65 = vector.extract_strided_slice %31 {offsets = [0, 0, 8], sizes = [2, 8, 8], strides = [1, 1, 1]} : vector<2x8x32xf32> to vector<2x8x8xf32>
    %66 = arith.truncf %65 : vector<2x8x8xf32> to vector<2x8x8xbf16>
    %67 = vector.extract_strided_slice %35 {offsets = [0, 0, 8], sizes = [2, 8, 8], strides = [1, 1, 1]} : vector<2x8x32xf32> to vector<2x8x8xf32>
    %68 = arith.truncf %67 : vector<2x8x8xf32> to vector<2x8x8xbf16>
    "tpu.trace_start"() <{level = 10 : i32, message = "bqd,bkd->bqk"}> : () -> ()
    %cst_22 = arith.constant dense<0.000000e+00> : vector<2x8x8xf32>
    %69 = tpu.matmul %64, %66, %cst_22 {dimension_numbers = #tpu.dot_dimension_numbers<[2], [2], [1], [1], [0, 0, 0, 1, 1, 1], [0], [0]>} : vector<2x8x8xbf16>, vector<2x8x8xbf16>, vector<2x8x8xf32> -> vector<2x8x8xf32>
    "tpu.trace_stop"() : () -> ()
    %cst_23 = arith.constant dense<0xFF800000> : vector<2x8xf32>
    %70 = vector.multi_reduction <maximumf>, %69, %cst_23 [2] : vector<2x8x8xf32> to vector<2x8xf32>
    %71 = vector.shape_cast %70 : vector<2x8xf32> to vector<2x8x1xf32>
    %72 = vector.broadcast %71 : vector<2x8x1xf32> to vector<2x8x8xf32>
    %73 = arith.subf %69, %72 : vector<2x8x8xf32>
    %74 = math.exp %73 : vector<2x8x8xf32>
    %cst_24 = arith.constant dense<0.000000e+00> : vector<2x8xf32>
    %75 = vector.multi_reduction <add>, %74, %cst_24 [2] : vector<2x8x8xf32> to vector<2x8xf32>
    %76 = vector.shape_cast %75 : vector<2x8xf32> to vector<2x8x1xf32>
    %77 = tpu.reciprocal %76 {approx = true} : vector<2x8x1xf32> -> vector<2x8x1xf32>
    %78 = vector.broadcast %77 : vector<2x8x1xf32> to vector<2x8x8xf32>
    %79 = arith.mulf %74, %78 : vector<2x8x8xf32>
    %80 = arith.truncf %79 : vector<2x8x8xf32> to vector<2x8x8xbf16>
    "tpu.trace_start"() <{level = 10 : i32, message = "bqk,bkd->bqd"}> : () -> ()
    %cst_25 = arith.constant dense<0.000000e+00> : vector<2x8x8xf32>
    %81 = tpu.matmul %80, %68, %cst_25 {dimension_numbers = #tpu.dot_dimension_numbers<[2], [1], [1], [2], [0, 0, 0, 1, 1, 2], [0], [0]>} : vector<2x8x8xbf16>, vector<2x8x8xbf16>, vector<2x8x8xf32> -> vector<2x8x8xf32>
    "tpu.trace_stop"() : () -> ()
    %82 = vector.extract_strided_slice %37 {offsets = [8, 0], sizes = [8, 32], strides = [1, 1]} : vector<32x32xbf16> to vector<8x32xbf16>
    %83 = vector.shape_cast %81 : vector<2x8x8xf32> to vector<16x8xf32>
    %84 = arith.truncf %83 : vector<16x8xf32> to vector<16x8xbf16>
    %cst_26 = arith.constant dense<0.000000e+00> : vector<16x32xf32>
    %85 = tpu.matmul %84, %82, %cst_26 {dimension_numbers = #tpu.dot_dimension_numbers<[1], [0], [0], [1], [0, 0, 1, 1], [], []>} : vector<16x8xbf16>, vector<8x32xbf16>, vector<16x32xf32> -> vector<16x32xf32>
    %86 = arith.addf %62, %85 : vector<16x32xf32>
    %87 = vector.extract_strided_slice %27 {offsets = [0, 0, 16], sizes = [2, 8, 8], strides = [1, 1, 1]} : vector<2x8x32xf32> to vector<2x8x8xf32>
    %88 = arith.truncf %87 : vector<2x8x8xf32> to vector<2x8x8xbf16>
    %89 = vector.extract_strided_slice %31 {offsets = [0, 0, 16], sizes = [2, 8, 8], strides = [1, 1, 1]} : vector<2x8x32xf32> to vector<2x8x8xf32>
    %90 = arith.truncf %89 : vector<2x8x8xf32> to vector<2x8x8xbf16>
    %91 = vector.extract_strided_slice %35 {offsets = [0, 0, 16], sizes = [2, 8, 8], strides = [1, 1, 1]} : vector<2x8x32xf32> to vector<2x8x8xf32>
    %92 = arith.truncf %91 : vector<2x8x8xf32> to vector<2x8x8xbf16>
    "tpu.trace_start"() <{level = 10 : i32, message = "bqd,bkd->bqk"}> : () -> ()
    %cst_27 = arith.constant dense<0.000000e+00> : vector<2x8x8xf32>
    %93 = tpu.matmul %88, %90, %cst_27 {dimension_numbers = #tpu.dot_dimension_numbers<[2], [2], [1], [1], [0, 0, 0, 1, 1, 1], [0], [0]>} : vector<2x8x8xbf16>, vector<2x8x8xbf16>, vector<2x8x8xf32> -> vector<2x8x8xf32>
    "tpu.trace_stop"() : () -> ()
    %cst_28 = arith.constant dense<0xFF800000> : vector<2x8xf32>
    %94 = vector.multi_reduction <maximumf>, %93, %cst_28 [2] : vector<2x8x8xf32> to vector<2x8xf32>
    %95 = vector.shape_cast %94 : vector<2x8xf32> to vector<2x8x1xf32>
    %96 = vector.broadcast %95 : vector<2x8x1xf32> to vector<2x8x8xf32>
    %97 = arith.subf %93, %96 : vector<2x8x8xf32>
    %98 = math.exp %97 : vector<2x8x8xf32>
    %cst_29 = arith.constant dense<0.000000e+00> : vector<2x8xf32>
    %99 = vector.multi_reduction <add>, %98, %cst_29 [2] : vector<2x8x8xf32> to vector<2x8xf32>
    %100 = vector.shape_cast %99 : vector<2x8xf32> to vector<2x8x1xf32>
    %101 = tpu.reciprocal %100 {approx = true} : vector<2x8x1xf32> -> vector<2x8x1xf32>
    %102 = vector.broadcast %101 : vector<2x8x1xf32> to vector<2x8x8xf32>
    %103 = arith.mulf %98, %102 : vector<2x8x8xf32>
    %104 = arith.truncf %103 : vector<2x8x8xf32> to vector<2x8x8xbf16>
    "tpu.trace_start"() <{level = 10 : i32, message = "bqk,bkd->bqd"}> : () -> ()
    %cst_30 = arith.constant dense<0.000000e+00> : vector<2x8x8xf32>
    %105 = tpu.matmul %104, %92, %cst_30 {dimension_numbers = #tpu.dot_dimension_numbers<[2], [1], [1], [2], [0, 0, 0, 1, 1, 2], [0], [0]>} : vector<2x8x8xbf16>, vector<2x8x8xbf16>, vector<2x8x8xf32> -> vector<2x8x8xf32>
    "tpu.trace_stop"() : () -> ()
    %106 = vector.extract_strided_slice %37 {offsets = [16, 0], sizes = [8, 32], strides = [1, 1]} : vector<32x32xbf16> to vector<8x32xbf16>
    %107 = vector.shape_cast %105 : vector<2x8x8xf32> to vector<16x8xf32>
    %108 = arith.truncf %107 : vector<16x8xf32> to vector<16x8xbf16>
    %cst_31 = arith.constant dense<0.000000e+00> : vector<16x32xf32>
    %109 = tpu.matmul %108, %106, %cst_31 {dimension_numbers = #tpu.dot_dimension_numbers<[1], [0], [0], [1], [0, 0, 1, 1], [], []>} : vector<16x8xbf16>, vector<8x32xbf16>, vector<16x32xf32> -> vector<16x32xf32>
    %110 = arith.addf %86, %109 : vector<16x32xf32>
    %111 = vector.extract_strided_slice %27 {offsets = [0, 0, 24], sizes = [2, 8, 8], strides = [1, 1, 1]} : vector<2x8x32xf32> to vector<2x8x8xf32>
    %112 = arith.truncf %111 : vector<2x8x8xf32> to vector<2x8x8xbf16>
    %113 = vector.extract_strided_slice %31 {offsets = [0, 0, 24], sizes = [2, 8, 8], strides = [1, 1, 1]} : vector<2x8x32xf32> to vector<2x8x8xf32>
    %114 = arith.truncf %113 : vector<2x8x8xf32> to vector<2x8x8xbf16>
    %115 = vector.extract_strided_slice %35 {offsets = [0, 0, 24], sizes = [2, 8, 8], strides = [1, 1, 1]} : vector<2x8x32xf32> to vector<2x8x8xf32>
    %116 = arith.truncf %115 : vector<2x8x8xf32> to vector<2x8x8xbf16>
    "tpu.trace_start"() <{level = 10 : i32, message = "bqd,bkd->bqk"}> : () -> ()
    %cst_32 = arith.constant dense<0.000000e+00> : vector<2x8x8xf32>
    %117 = tpu.matmul %112, %114, %cst_32 {dimension_numbers = #tpu.dot_dimension_numbers<[2], [2], [1], [1], [0, 0, 0, 1, 1, 1], [0], [0]>} : vector<2x8x8xbf16>, vector<2x8x8xbf16>, vector<2x8x8xf32> -> vector<2x8x8xf32>
    "tpu.trace_stop"() : () -> ()
    %cst_33 = arith.constant dense<0xFF800000> : vector<2x8xf32>
    %118 = vector.multi_reduction <maximumf>, %117, %cst_33 [2] : vector<2x8x8xf32> to vector<2x8xf32>
    %119 = vector.shape_cast %118 : vector<2x8xf32> to vector<2x8x1xf32>
    %120 = vector.broadcast %119 : vector<2x8x1xf32> to vector<2x8x8xf32>
    %121 = arith.subf %117, %120 : vector<2x8x8xf32>
    %122 = math.exp %121 : vector<2x8x8xf32>
    %cst_34 = arith.constant dense<0.000000e+00> : vector<2x8xf32>
    %123 = vector.multi_reduction <add>, %122, %cst_34 [2] : vector<2x8x8xf32> to vector<2x8xf32>
    %124 = vector.shape_cast %123 : vector<2x8xf32> to vector<2x8x1xf32>
    %125 = tpu.reciprocal %124 {approx = true} : vector<2x8x1xf32> -> vector<2x8x1xf32>
    %126 = vector.broadcast %125 : vector<2x8x1xf32> to vector<2x8x8xf32>
    %127 = arith.mulf %122, %126 : vector<2x8x8xf32>
    %128 = arith.truncf %127 : vector<2x8x8xf32> to vector<2x8x8xbf16>
    "tpu.trace_start"() <{level = 10 : i32, message = "bqk,bkd->bqd"}> : () -> ()
    %cst_35 = arith.constant dense<0.000000e+00> : vector<2x8x8xf32>
    %129 = tpu.matmul %128, %116, %cst_35 {dimension_numbers = #tpu.dot_dimension_numbers<[2], [1], [1], [2], [0, 0, 0, 1, 1, 2], [0], [0]>} : vector<2x8x8xbf16>, vector<2x8x8xbf16>, vector<2x8x8xf32> -> vector<2x8x8xf32>
    "tpu.trace_stop"() : () -> ()
    %130 = vector.extract_strided_slice %37 {offsets = [24, 0], sizes = [8, 32], strides = [1, 1]} : vector<32x32xbf16> to vector<8x32xbf16>
    %131 = vector.shape_cast %129 : vector<2x8x8xf32> to vector<16x8xf32>
    %132 = arith.truncf %131 : vector<16x8xf32> to vector<16x8xbf16>
    %cst_36 = arith.constant dense<0.000000e+00> : vector<16x32xf32>
    %133 = tpu.matmul %132, %130, %cst_36 {dimension_numbers = #tpu.dot_dimension_numbers<[1], [0], [0], [1], [0, 0, 1, 1], [], []>} : vector<16x8xbf16>, vector<8x32xbf16>, vector<16x32xf32> -> vector<16x32xf32>
    %134 = arith.addf %110, %133 : vector<16x32xf32>
    %135 = vector.broadcast %10 : vector<1x32xf32> to vector<16x32xf32>
    %136 = arith.addf %134, %135 : vector<16x32xf32>
    %137 = arith.addf %4, %136 : vector<16x32xf32>
    %cst_37 = arith.constant dense<0.000000e+00> : vector<16xf32>
    %138 = vector.multi_reduction <add>, %137, %cst_37 [1] : vector<16x32xf32> to vector<16xf32>
    %139 = vector.shape_cast %138 : vector<16xf32> to vector<16x1xf32>
    %cst_38 = arith.constant 3.200000e+01 : f32
    %140 = vector.broadcast %cst_38 : f32 to vector<16x1xf32>
    %141 = arith.divf %139, %140 : vector<16x1xf32>
    %142 = vector.broadcast %141 : vector<16x1xf32> to vector<16x32xf32>
    %143 = arith.subf %137, %142 : vector<16x32xf32>
    %144 = arith.mulf %143, %143 : vector<16x32xf32>
    %cst_39 = arith.constant dense<0.000000e+00> : vector<16xf32>
    %145 = vector.multi_reduction <add>, %144, %cst_39 [1] : vector<16x32xf32> to vector<16xf32>
    %146 = vector.shape_cast %145 : vector<16xf32> to vector<16x1xf32>
    %cst_40 = arith.constant 3.200000e+01 : f32
    %147 = vector.broadcast %cst_40 : f32 to vector<16x1xf32>
    %148 = arith.divf %146, %147 : vector<16x1xf32>
    %cst_41 = arith.constant 9.99999974E-6 : f32
    %149 = vector.broadcast %cst_41 : f32 to vector<16x1xf32>
    %150 = arith.addf %148, %149 : vector<16x1xf32>
    %151 = math.rsqrt %150 : vector<16x1xf32>
    %152 = vector.broadcast %151 : vector<16x1xf32> to vector<16x32xf32>
    %153 = arith.mulf %143, %152 : vector<16x32xf32>
    %154 = vector.broadcast %11 : vector<1x32xf32> to vector<16x32xf32>
    %155 = arith.mulf %153, %154 : vector<16x32xf32>
    %156 = vector.broadcast %12 : vector<1x32xf32> to vector<16x32xf32>
    %157 = arith.addf %155, %156 : vector<16x32xf32>
    %c0_42 = arith.constant 0 : index
    %c0_43 = arith.constant 0 : index
    %c0_44 = arith.constant 0 : index
    %158 = vector.load %arg5[%c0_42, %c0_43, %c0_44] : memref<1x32x64xbf16, #tpu.memory_space<vmem>>, vector<1x32x64xbf16>
    %159 = vector.shape_cast %158 : vector<1x32x64xbf16> to vector<32x64xbf16>
    %160 = arith.truncf %157 : vector<16x32xf32> to vector<16x32xbf16>
    %cst_45 = arith.constant dense<0.000000e+00> : vector<16x64xf32>
    %161 = tpu.matmul %160, %159, %cst_45 {dimension_numbers = #tpu.dot_dimension_numbers<[1], [0], [0], [1], [0, 0, 1, 1], [], []>} : vector<16x32xbf16>, vector<32x64xbf16>, vector<16x64xf32> -> vector<16x64xf32>
    %162 = vector.broadcast %17 : vector<1x64xf32> to vector<16x64xf32>
    %163 = arith.addf %161, %162 : vector<16x64xf32>
    %cst_46 = arith.constant 0.000000e+00 : f32
    %164 = vector.broadcast %cst_46 : f32 to vector<16x64xf32>
    %165 = arith.maximumf %163, %164 : vector<16x64xf32>
    %c0_47 = arith.constant 0 : index
    %c0_48 = arith.constant 0 : index
    %c0_49 = arith.constant 0 : index
    %166 = vector.load %arg6[%c0_47, %c0_48, %c0_49] : memref<1x64x32xbf16, #tpu.memory_space<vmem>>, vector<1x64x32xbf16>
    %167 = vector.shape_cast %166 : vector<1x64x32xbf16> to vector<64x32xbf16>
    %168 = arith.truncf %165 : vector<16x64xf32> to vector<16x64xbf16>
    %cst_50 = arith.constant dense<0.000000e+00> : vector<16x32xf32>
    %169 = tpu.matmul %168, %167, %cst_50 {dimension_numbers = #tpu.dot_dimension_numbers<[1], [0], [0], [1], [0, 0, 1, 1], [], []>} : vector<16x64xbf16>, vector<64x32xbf16>, vector<16x32xf32> -> vector<16x32xf32>
    %170 = vector.broadcast %13 : vector<1x32xf32> to vector<16x32xf32>
    %171 = arith.addf %169, %170 : vector<16x32xf32>
    %172 = arith.addf %157, %171 : vector<16x32xf32>
    %cst_51 = arith.constant dense<0.000000e+00> : vector<16xf32>
    %173 = vector.multi_reduction <add>, %172, %cst_51 [1] : vector<16x32xf32> to vector<16xf32>
    %174 = vector.shape_cast %173 : vector<16xf32> to vector<16x1xf32>
    %cst_52 = arith.constant 3.200000e+01 : f32
    %175 = vector.broadcast %cst_52 : f32 to vector<16x1xf32>
    %176 = arith.divf %174, %175 : vector<16x1xf32>
    %177 = vector.broadcast %176 : vector<16x1xf32> to vector<16x32xf32>
    %178 = arith.subf %172, %177 : vector<16x32xf32>
    %179 = arith.mulf %178, %178 : vector<16x32xf32>
    %cst_53 = arith.constant dense<0.000000e+00> : vector<16xf32>
    %180 = vector.multi_reduction <add>, %179, %cst_53 [1] : vector<16x32xf32> to vector<16xf32>
    %181 = vector.shape_cast %180 : vector<16xf32> to vector<16x1xf32>
    %cst_54 = arith.constant 3.200000e+01 : f32
    %182 = vector.broadcast %cst_54 : f32 to vector<16x1xf32>
    %183 = arith.divf %181, %182 : vector<16x1xf32>
    %cst_55 = arith.constant 9.99999974E-6 : f32
    %184 = vector.broadcast %cst_55 : f32 to vector<16x1xf32>
    %185 = arith.addf %183, %184 : vector<16x1xf32>
    %186 = math.rsqrt %185 : vector<16x1xf32>
    %187 = vector.broadcast %186 : vector<16x1xf32> to vector<16x32xf32>
    %188 = arith.mulf %178, %187 : vector<16x32xf32>
    %189 = vector.broadcast %14 : vector<1x32xf32> to vector<16x32xf32>
    %190 = arith.mulf %188, %189 : vector<16x32xf32>
    %191 = vector.broadcast %15 : vector<1x32xf32> to vector<16x32xf32>
    %192 = arith.addf %190, %191 : vector<16x32xf32>
    %193 = vector.shape_cast %192 : vector<16x32xf32> to vector<2x8x32xf32>
    %c0_56 = arith.constant 0 : index
    %c0_57 = arith.constant 0 : index
    %c0_58 = arith.constant 0 : index
    %194 = vector.load %arg9[%c0_56, %c0_57, %c0_58] : memref<2x8x32xf32, #tpu.memory_space<vmem>>, vector<2x8x32xf32>
    tpu.vector_store %arg9[%c0_56, %c0_57, %c0_58], %193 {strides = array<i32>} : memref<2x8x32xf32, #tpu.memory_space<vmem>>, vector<2x8x32xf32>,
    return
  }
  func.func @transform_0(%arg0: i32, %arg1: i32) -> (i32, i32, i32) {
    %c0_i32 = arith.constant 0 : i32
    %c0_i32_0 = arith.constant 0 : i32
    %c0_i32_1 = arith.constant 0 : i32
    return %arg0, %c0_i32, %c0_i32_0 : i32, i32, i32
  }
  func.func @transform_1(%arg0: i32, %arg1: i32) -> (i32, i32, i32) {
    %c0_i32 = arith.constant 0 : i32
    %c0_i32_0 = arith.constant 0 : i32
    %c0_i32_1 = arith.constant 0 : i32
    return %arg1, %c0_i32, %c0_i32_0 : i32, i32, i32
  }
  func.func @transform_2(%arg0: i32, %arg1: i32) -> (i32, i32, i32) {
    %c0_i32 = arith.constant 0 : i32
    %c0_i32_0 = arith.constant 0 : i32
    %c0_i32_1 = arith.constant 0 : i32
    return %arg1, %c0_i32, %c0_i32_0 : i32, i32, i32
  }
  func.func @transform_3(%arg0: i32, %arg1: i32) -> (i32, i32, i32) {
    %c0_i32 = arith.constant 0 : i32
    %c0_i32_0 = arith.constant 0 : i32
    %c0_i32_1 = arith.constant 0 : i32
    return %arg1, %c0_i32, %c0_i32_0 : i32, i32, i32
  }
  func.func @transform_4(%arg0: i32, %arg1: i32) -> (i32, i32, i32) {
    %c0_i32 = arith.constant 0 : i32
    %c0_i32_0 = arith.constant 0 : i32
    %c0_i32_1 = arith.constant 0 : i32
    return %arg1, %c0_i32, %c0_i32_0 : i32, i32, i32
  }
  func.func @transform_5(%arg0: i32, %arg1: i32) -> (i32, i32, i32) {
    %c0_i32 = arith.constant 0 : i32
    %c0_i32_0 = arith.constant 0 : i32
    %c0_i32_1 = arith.constant 0 : i32
    return %arg1, %c0_i32, %c0_i32_0 : i32, i32, i32
  }
  func.func @transform_6(%arg0: i32, %arg1: i32) -> (i32, i32, i32) {
    %c0_i32 = arith.constant 0 : i32
    %c0_i32_0 = arith.constant 0 : i32
    %c0_i32_1 = arith.constant 0 : i32
    return %arg1, %c0_i32, %c0_i32_0 : i32, i32, i32
  }
  func.func @transform_7(%arg0: i32, %arg1: i32) -> (i32, i32, i32) {
    %c0_i32 = arith.constant 0 : i32
    %c0_i32_0 = arith.constant 0 : i32
    %c0_i32_1 = arith.constant 0 : i32
    return %arg0, %c0_i32, %c0_i32_0 : i32, i32, i32
  }
}

</mosaic_0001>

<llo_original>
// kernel: tpu_custom_call.1
$region0: #{tpu_custom_call.1}
  #allocation0 [shape = 'u32[]', space=smem, size = 0x4, offset = 0x4, fixed_abs, tag = 'smem constant byte address 0x4 - core index']
  #allocation1 [shape = 'u32[144,128]{1,0:T(1,128)}', space=vmem, size = 0x12000, scoped, tag = 'internal scratch']
  %s0 = inlined_call_operand.vmem [shape: f32[2,8,32], index: 0, kind: input, shape index: {}]
  %s1 = inlined_call_operand.vmem [shape: bf16[2,32,96], index: 1, kind: input, shape index: {}]
  %s2 = inlined_call_operand.vmem [shape: bf16[2,32,32], index: 2, kind: input, shape index: {}]
  %s3 = inlined_call_operand.vmem [shape: bf16[2,32,64], index: 3, kind: input, shape index: {}]
  %s4 = inlined_call_operand.vmem [shape: bf16[2,64,32], index: 4, kind: input, shape index: {}]
  %s5 = inlined_call_operand.vmem [shape: f32[2,9,32], index: 5, kind: input, shape index: {}]
  %s6 = inlined_call_operand.vmem [shape: f32[2,1,64], index: 6, kind: input, shape index: {}]
  %s7 = inlined_call_operand.hbm [shape: f32[2,8,32], index: 7, kind: output, shape index: {}]
  %s8 = sld [smem:[#allocation0]]
  $region65: #{tpu_custom_call.1} parent=0
    _
  %s10 = ssub.s32 1, %s8
  %s11 = scalar_select 0, %s10, %s8
  $region1: #{tpu_custom_call.1} parent=0
    #allocation2 [shape = 'u8[8192]{0}', space=vmem, size = 0x2000, scoped, tag = 'output window, operand 0, single buffered']
    #allocation3 [shape = 's32[2]{0}', space=sflag, size = 0x8, scoped, tag = 'scoped memory for tpu_custom_call.1']
    %12 = vsyncpa [#allocation3], 0
    loop: start=0, step=1, limit=4
    $region2: #{tpu_custom_call.1} parent=1 // loop_pre_header
      _
    $region3: #{tpu_custom_call.1} parent=1 // loop_header
      %s14 = sphi 0, %s18
      %p15 = scmp.ge.s32.totalorder %s14, 4
      %s21 = sphi 0, %s33
      %s22 = sphi 0, %s29
      %s23 = sphi 0, %s21
      %s24 = sphi 0, %s22
      %s25 = sphi 0, %s23
      %s26 = sphi 0, %s24
      %s36 = sphi 0, %s38
      %s39 = sphi 0, %s36
      %s40 = sphi 0, %s39
      %s56 = sphi 0, %s40
      %s62 = sphi 0, %s64
      %s65 = sphi 0, %s62
      %s66 = sphi 0, %s65
      %s82 = sphi 0, %s66
      %s88 = sphi 0, %s90
      %s91 = sphi 0, %s88
      %s92 = sphi 0, %s91
      %s108 = sphi 0, %s92
      %s114 = sphi 0, %s116
      %s117 = sphi 0, %s114
      %s118 = sphi 0, %s117
      %s134 = sphi 0, %s118
      %s140 = sphi 0, %s142
      %s143 = sphi 0, %s140
      %s144 = sphi 0, %s143
      %s160 = sphi 0, %s144
      %s166 = sphi 0, %s168
      %s169 = sphi 0, %s166
      %s170 = sphi 0, %s169
      %s186 = sphi 0, %s170
      %s192 = sphi 0, %s194
      %s195 = sphi 0, %s192
      %s196 = sphi 0, %s195
      %s212 = sphi 0, %s196
      %s218 = sphi 0, %s220
      %s221 = sphi 0, %s218
      %s222 = sphi 0, %s221
      %s238 = sphi 0, %s222
    $region4: #{tpu_custom_call.1} parent=1 // loop_header_branch
      %17 = sbr.rel (%p15) target = $region8
    $region5: #{tpu_custom_call.1} parent=1 // loop_body
      %s19 = ssub.s32 %s14, 1
      %s20 = ssub.s32 %s14, 2
      %s27 = sadd.s32 1, %s22
      %p28 = scmp.ge.s32.totalorder %s27, 2
      %s29 = scalar_select %p28, 0, %s27
      %s30 = sadd.s32 1, %s21
      %s31 = scalar_select %p28, %s30, %s21
      %p32 = scmp.ge.s32.totalorder %s31, 1
      %s33 = scalar_select %p32, 0, %s31
      %s34 = ssub.s32 %s21, %s33
      %p35 = scmp.eq.s32.totalorder %s34, 0
      %s37 = sadd.s32 %s36, 1
      %s38 = scalar_select %p35, %s36, %s37
      %p41 = pneg %p35
      %p42 = scmp.eq.s32.totalorder %s14, 1
      %p43 = por %p41, %p42
      %p44 = scmp.ne.s32.totalorder %s36, %s39
      %p45 = scmp.eq.s32.totalorder %s14, 0
      %p46 = por %p44, %p45
      %p47 = scmp.ne.s32.totalorder %s36, %s39
      %p48 = scmp.eq.s32.totalorder %s19, 1
      %p49 = por %p47, %p48
      %p50 = scmp.ne.s32.totalorder %s39, %s40
      %p51 = scmp.eq.s32.totalorder %s19, 0
      %p52 = por %p50, %p51
      %p53 = scmp.ne.s32.totalorder %s39, %s40
      %p54 = scmp.eq.s32.totalorder %s20, 1
      %p55 = por %p53, %p54
      %p57 = scmp.ne.s32.totalorder %s40, %s56
      %p58 = scmp.eq.s32.totalorder %s20, 0
      %p59 = por %p57, %p58
      %s60 = ssub.s32 %s22, %s29
      %p61 = scmp.eq.s32.totalorder %s60, 0
      %s63 = sadd.s32 %s62, 1
      %s64 = scalar_select %p61, %s62, %s63
      %p67 = pneg %p61
      %p68 = scmp.eq.s32.totalorder %s14, 1
      %p69 = por %p67, %p68
      %p70 = scmp.ne.s32.totalorder %s62, %s65
      %p71 = scmp.eq.s32.totalorder %s14, 0
      %p72 = por %p70, %p71
      %p73 = scmp.ne.s32.totalorder %s62, %s65
      %p74 = scmp.eq.s32.totalorder %s19, 1
      %p75 = por %p73, %p74
      %p76 = scmp.ne.s32.totalorder %s65, %s66
      %p77 = scmp.eq.s32.totalorder %s19, 0
      %p78 = por %p76, %p77
      %p79 = scmp.ne.s32.totalorder %s65, %s66
      %p80 = scmp.eq.s32.totalorder %s20, 1
      %p81 = por %p79, %p80
      %p83 = scmp.ne.s32.totalorder %s66, %s82
      %p84 = scmp.eq.s32.totalorder %s20, 0
      %p85 = por %p83, %p84
      %s86 = ssub.s32 %s22, %s29
      %p87 = scmp.eq.s32.totalorder %s86, 0
      %s89 = sadd.s32 %s88, 1
      %s90 = scalar_select %p87, %s88, %s89
      %p93 = pneg %p87
      %p94 = scmp.eq.s32.totalorder %s14, 1
      %p95 = por %p93, %p94
      %p96 = scmp.ne.s32.totalorder %s88, %s91
      %p97 = scmp.eq.s32.totalorder %s14, 0
      %p98 = por %p96, %p97
      %p99 = scmp.ne.s32.totalorder %s88, %s91
      %p100 = scmp.eq.s32.totalorder %s19, 1
      %p101 = por %p99, %p100
      %p102 = scmp.ne.s32.totalorder %s91, %s92
      %p103 = scmp.eq.s32.totalorder %s19, 0
      %p104 = por %p102, %p103
      %p105 = scmp.ne.s32.totalorder %s91, %s92
      %p106 = scmp.eq.s32.totalorder %s20, 1
      %p107 = por %p105, %p106
      %p109 = scmp.ne.s32.totalorder %s92, %s108
      %p110 = scmp.eq.s32.totalorder %s20, 0
      %p111 = por %p109, %p110
      %s112 = ssub.s32 %s22, %s29
      %p113 = scmp.eq.s32.totalorder %s112, 0
      %s115 = sadd.s32 %s114, 1
      %s116 = scalar_select %p113, %s114, %s115
      %p119 = pneg %p113
      %p120 = scmp.eq.s32.totalorder %s14, 1
      %p121 = por %p119, %p120
      %p122 = scmp.ne.s32.totalorder %s114, %s117
      %p123 = scmp.eq.s32.totalorder %s14, 0
      %p124 = por %p122, %p123
      %p125 = scmp.ne.s32.totalorder %s114, %s117
      %p126 = scmp.eq.s32.totalorder %s19, 1
      %p127 = por %p125, %p126
      %p128 = scmp.ne.s32.totalorder %s117, %s118
      %p129 = scmp.eq.s32.totalorder %s19, 0
      %p130 = por %p128, %p129
      %p131 = scmp.ne.s32.totalorder %s117, %s118
      %p132 = scmp.eq.s32.totalorder %s20, 1
      %p133 = por %p131, %p132
      %p135 = scmp.ne.s32.totalorder %s118, %s134
      %p136 = scmp.eq.s32.totalorder %s20, 0
      %p137 = por %p135, %p136
      %s138 = ssub.s32 %s22, %s29
      %p139 = scmp.eq.s32.totalorder %s138, 0
      %s141 = sadd.s32 %s140, 1
      %s142 = scalar_select %p139, %s140, %s141
      %p145 = pneg %p139
      %p146 = scmp.eq.s32.totalorder %s14, 1
      %p147 = por %p145, %p146
      %p148 = scmp.ne.s32.totalorder %s140, %s143
      %p149 = scmp.eq.s32.totalorder %s14, 0
      %p150 = por %p148, %p149
      %p151 = scmp.ne.s32.totalorder %s140, %s143
      %p152 = scmp.eq.s32.totalorder %s19, 1
      %p153 = por %p151, %p152
      %p154 = scmp.ne.s32.totalorder %s143, %s144
      %p155 = scmp.eq.s32.totalorder %s19, 0
      %p156 = por %p154, %p155
      %p157 = scmp.ne.s32.totalorder %s143, %s144
      %p158 = scmp.eq.s32.totalorder %s20, 1
      %p159 = por %p157, %p158
      %p161 = scmp.ne.s32.totalorder %s144, %s160
      %p162 = scmp.eq.s32.totalorder %s20, 0
      %p163 = por %p161, %p162
      %s164 = ssub.s32 %s22, %s29
      %p165 = scmp.eq.s32.totalorder %s164, 0
      %s167 = sadd.s32 %s166, 1
      %s168 = scalar_select %p165, %s166, %s167
      %p171 = pneg %p165
      %p172 = scmp.eq.s32.totalorder %s14, 1
      %p173 = por %p171, %p172
      %p174 = scmp.ne.s32.totalorder %s166, %s169
      %p175 = scmp.eq.s32.totalorder %s14, 0
      %p176 = por %p174, %p175
      %p177 = scmp.ne.s32.totalorder %s166, %s169
      %p178 = scmp.eq.s32.totalorder %s19, 1
      %p179 = por %p177, %p178
      %p180 = scmp.ne.s32.totalorder %s169, %s170
      %p181 = scmp.eq.s32.totalorder %s19, 0
      %p182 = por %p180, %p181
      %p183 = scmp.ne.s32.totalorder %s169, %s170
      %p184 = scmp.eq.s32.totalorder %s20, 1
      %p185 = por %p183, %p184
      %p187 = scmp.ne.s32.totalorder %s170, %s186
      %p188 = scmp.eq.s32.totalorder %s20, 0
      %p189 = por %p187, %p188
      %s190 = ssub.s32 %s22, %s29
      %p191 = scmp.eq.s32.totalorder %s190, 0
      %s193 = sadd.s32 %s192, 1
      %s194 = scalar_select %p191, %s192, %s193
      %p197 = pneg %p191
      %p198 = scmp.eq.s32.totalorder %s14, 1
      %p199 = por %p197, %p198
      %p200 = scmp.ne.s32.totalorder %s192, %s195
      %p201 = scmp.eq.s32.totalorder %s14, 0
      %p202 = por %p200, %p201
      %p203 = scmp.ne.s32.totalorder %s192, %s195
      %p204 = scmp.eq.s32.totalorder %s19, 1
      %p205 = por %p203, %p204
      %p206 = scmp.ne.s32.totalorder %s195, %s196
      %p207 = scmp.eq.s32.totalorder %s19, 0
      %p208 = por %p206, %p207
      %p209 = scmp.ne.s32.totalorder %s195, %s196
      %p210 = scmp.eq.s32.totalorder %s20, 1
      %p211 = por %p209, %p210
      %p213 = scmp.ne.s32.totalorder %s196, %s212
      %p214 = scmp.eq.s32.totalorder %s20, 0
      %p215 = por %p213, %p214
      %s216 = ssub.s32 %s21, %s33
      %p217 = scmp.eq.s32.totalorder %s216, 0
      %s219 = sadd.s32 %s218, 1
      %s220 = scalar_select %p217, %s218, %s219
      %p223 = pneg %p217
      %p224 = scmp.eq.s32.totalorder %s14, 1
      %p225 = por %p223, %p224
      %p226 = scmp.ne.s32.totalorder %s218, %s221
      %p227 = scmp.eq.s32.totalorder %s14, 0
      %p228 = por %p226, %p227
      %p229 = scmp.ne.s32.totalorder %s218, %s221
      %p230 = scmp.eq.s32.totalorder %s19, 1
      %p231 = por %p229, %p230
      %p232 = scmp.ne.s32.totalorder %s221, %s222
      %p233 = scmp.eq.s32.totalorder %s19, 0
      %p234 = por %p232, %p233
      %p235 = scmp.ne.s32.totalorder %s221, %s222
      %p236 = scmp.eq.s32.totalorder %s20, 1
      %p237 = por %p235, %p236
      %p239 = scmp.ne.s32.totalorder %s222, %s238
      %p240 = scmp.eq.s32.totalorder %s20, 0
      %p241 = por %p239, %p240
      %p242 = scmp.le.s32.totalorder 1, %s14
      %p243 = scmp.lt.s32.totalorder %s14, 3
      %p244 = pnand %p242, %p243
      %p245 = pneg %p244
      // Predicated region
      $region9: #{tpu_custom_call.1} parent=5 // pred_check
        _
      $region10: #{tpu_custom_call.1} parent=5 // pred_check_branch
        %247 = sbr.rel (%p244) target = $region12
      $region11: #{tpu_custom_call.1} parent=5 // pred_region
        %s248 = ssub.s32 %s14, 1
        // Predicated region
        $region13: #{tpu_custom_call.1} parent=11 // pred_check
          %p249 = pneg %p52
        $region14: #{tpu_custom_call.1} parent=11 // pred_check_branch
          %251 = sbr.rel (%p249) target = $region16
        $region15: #{tpu_custom_call.1} parent=11 // pred_region
          %s252 = smul.u32 2, %s23
          %p253 = scmp.lt.s32.totalorder %s252, 1
          %s254 = scalar_select %p253, %s252, 1
          %s255 = smul.addr %s254, 8
          %s256 = scalar_lea.vmem %s0, %s255
          %s257 = smul.u32 2, %s23
        $region16: #{tpu_custom_call.1} parent=11 // pred_fallthru
          _
      $region12: #{tpu_custom_call.1} parent=5 // pred_fallthru
        _
      %p258 = scmp.lt.s32.totalorder %s14, 2
      // Predicated region
      $region17: #{tpu_custom_call.1} parent=5 // pred_check
        %p259 = pneg %p258
      $region18: #{tpu_custom_call.1} parent=5 // pred_check_branch
        %261 = sbr.rel (%p259) target = $region20
      $region19: #{tpu_custom_call.1} parent=5 // pred_region
        // Predicated region
        $region21: #{tpu_custom_call.1} parent=19 // pred_check
          %p262 = pneg %p72
        $region22: #{tpu_custom_call.1} parent=19 // pred_check_branch
          %264 = sbr.rel (%p262) target = $region24
        $region23: #{tpu_custom_call.1} parent=19 // pred_region
          %p265 = scmp.lt.s32.totalorder %s22, 1
          %s266 = scalar_select %p265, %s22, 1
          %s267 = smul.addr %s266, 4
          %s268 = smul.addr %s267, 4
          %s269 = scalar_lea.vmem %s1, %s268
        $region24: #{tpu_custom_call.1} parent=19 // pred_fallthru
          _
        // Predicated region
        $region25: #{tpu_custom_call.1} parent=19 // pred_check
          %p270 = pneg %p98
        $region26: #{tpu_custom_call.1} parent=19 // pred_check_branch
          %272 = sbr.rel (%p270) target = $region28
        $region27: #{tpu_custom_call.1} parent=19 // pred_region
          %p273 = scmp.lt.s32.totalorder %s22, 1
          %s274 = scalar_select %p273, %s22, 1
          %s275 = smul.addr %s274, 4
          %s276 = smul.addr %s275, 4
          %s277 = scalar_lea.vmem %s2, %s276
        $region28: #{tpu_custom_call.1} parent=19 // pred_fallthru
          _
        // Predicated region
        $region29: #{tpu_custom_call.1} parent=19 // pred_check
          %p278 = pneg %p124
        $region30: #{tpu_custom_call.1} parent=19 // pred_check_branch
          %280 = sbr.rel (%p278) target = $region32
        $region31: #{tpu_custom_call.1} parent=19 // pred_region
          %p281 = scmp.lt.s32.totalorder %s22, 1
          %s282 = scalar_select %p281, %s22, 1
          %s283 = smul.addr %s282, 4
          %s284 = smul.addr %s283, 4
          %s285 = scalar_lea.vmem %s3, %s284
        $region32: #{tpu_custom_call.1} parent=19 // pred_fallthru
          _
        // Predicated region
        $region33: #{tpu_custom_call.1} parent=19 // pred_check
          %p286 = pneg %p150
        $region34: #{tpu_custom_call.1} parent=19 // pred_check_branch
          %288 = sbr.rel (%p286) target = $region36
        $region35: #{tpu_custom_call.1} parent=19 // pred_region
          %p289 = scmp.lt.s32.totalorder %s22, 1
          %s290 = scalar_select %p289, %s22, 1
          %s291 = smul.addr %s290, 8
          %s292 = smul.addr %s291, 4
          %s293 = scalar_lea.vmem %s4, %s292
        $region36: #{tpu_custom_call.1} parent=19 // pred_fallthru
          _
        // Predicated region
        $region37: #{tpu_custom_call.1} parent=19 // pred_check
          %p294 = pneg %p176
        $region38: #{tpu_custom_call.1} parent=19 // pred_check_branch
          %296 = sbr.rel (%p294) target = $region40
        $region39: #{tpu_custom_call.1} parent=19 // pred_region
          %p297 = scmp.lt.s32.totalorder %s22, 1
          %s298 = scalar_select %p297, %s22, 1
          %s299 = smul.addr %s298, 2
          %s300 = smul.addr %s299, 8
          %s301 = scalar_lea.vmem %s5, %s300
        $region40: #{tpu_custom_call.1} parent=19 // pred_fallthru
          _
        // Predicated region
        $region41: #{tpu_custom_call.1} parent=19 // pred_check
          %p302 = pneg %p202
        $region42: #{tpu_custom_call.1} parent=19 // pred_check_branch
          %304 = sbr.rel (%p302) target = $region44
        $region43: #{tpu_custom_call.1} parent=19 // pred_region
          %p305 = scmp.lt.s32.totalorder %s22, 1
          %s306 = scalar_select %p305, %s22, 1
          %s307 = scalar_lea.vmem %s6, %s306
        $region44: #{tpu_custom_call.1} parent=19 // pred_fallthru
          _
      $region20: #{tpu_custom_call.1} parent=5 // pred_fallthru
        _
      %p308 = scmp.le.s32.totalorder 1, %s14
      %p309 = scmp.lt.s32.totalorder %s14, 3
      %p310 = pnand %p308, %p309
      %p311 = pneg %p310
      // Predicated region
      $region45: #{tpu_custom_call.1} parent=5 // pred_check
        _
      $region46: #{tpu_custom_call.1} parent=5 // pred_check_branch
        %313 = sbr.rel (%p310) target = $region48
      $region47: #{tpu_custom_call.1} parent=5 // pred_region
        %s314 = ssub.s32 %s14, 1
        %s315 = smul.u32 2, %s23
        %p316 = scmp.lt.s32.totalorder %s315, 1
        %s317 = scalar_select %p316, %s315, 1
        %s318 = smul.addr %s317, 8
        %s319 = scalar_lea.vmem %s0, %s318
        %p320 = pneg %p52
        %p321 = pneg %p49
        %p322 = scmp.lt.s32.totalorder %s24, 1
        %s323 = scalar_select %p322, %s24, 1
        %s324 = smul.addr %s323, 4
        %s325 = smul.addr %s324, 4
        %s326 = scalar_lea.vmem %s1, %s325
        %p327 = pneg %p78
        %p328 = pneg %p75
        %p329 = scmp.lt.s32.totalorder %s24, 1
        %s330 = scalar_select %p329, %s24, 1
        %s331 = smul.addr %s330, 4
        %s332 = smul.addr %s331, 4
        %s333 = scalar_lea.vmem %s2, %s332
        %p334 = pneg %p104
        %p335 = pneg %p101
        %p336 = scmp.lt.s32.totalorder %s24, 1
        %s337 = scalar_select %p336, %s24, 1
        %s338 = smul.addr %s337, 4
        %s339 = smul.addr %s338, 4
        %s340 = scalar_lea.vmem %s3, %s339
        %p341 = pneg %p130
        %p342 = pneg %p127
        %p343 = scmp.lt.s32.totalorder %s24, 1
        %s344 = scalar_select %p343, %s24, 1
        %s345 = smul.addr %s344, 8
        %s346 = smul.addr %s345, 4
        %s347 = scalar_lea.vmem %s4, %s346
        %p348 = pneg %p156
        %p349 = pneg %p153
        %p350 = scmp.lt.s32.totalorder %s24, 1
        %s351 = scalar_select %p350, %s24, 1
        %s352 = smul.addr %s351, 2
        %s353 = smul.addr %s352, 8
        %s354 = scalar_lea.vmem %s5, %s353
        %p355 = pneg %p182
        %p356 = pneg %p179
        %p357 = scmp.lt.s32.totalorder %s24, 1
        %s358 = scalar_select %p357, %s24, 1
        %s359 = scalar_lea.vmem %s6, %s358
        %p360 = pneg %p208
        %p361 = pneg %p205
        %p362 = pneg %p234
        %p363 = pneg %p231
        %s364 = smul.u32 2, %s23
        %p365 = scmp.lt.s32.totalorder %s364, 1
        %s366 = scalar_select %p365, %s364, 1
        %s367 = smul.addr %s366, 8
        %s368 = scalar_lea.vmem %s0, %s367
        %s369 = smul.u32 2, %s23
        %p370 = scmp.lt.s32.totalorder %s24, 1
        %s371 = scalar_select %p370, %s24, 1
        %s372 = smul.addr %s371, 4
        %s373 = smul.addr %s372, 4
        %s374 = scalar_lea.vmem %s1, %s373
        %p375 = scmp.lt.s32.totalorder %s24, 1
        %s376 = scalar_select %p375, %s24, 1
        %s377 = smul.addr %s376, 4
        %s378 = smul.addr %s377, 4
        %s379 = scalar_lea.vmem %s2, %s378
        %p380 = scmp.lt.s32.totalorder %s24, 1
        %s381 = scalar_select %p380, %s24, 1
        %s382 = smul.addr %s381, 4
        %s383 = smul.addr %s382, 4
        %s384 = scalar_lea.vmem %s3, %s383
        %p385 = scmp.lt.s32.totalorder %s24, 1
        %s386 = scalar_select %p385, %s24, 1
        %s387 = smul.addr %s386, 8
        %s388 = smul.addr %s387, 4
        %s389 = scalar_lea.vmem %s4, %s388
        %p390 = scmp.lt.s32.totalorder %s24, 1
        %s391 = scalar_select %p390, %s24, 1
        %s392 = smul.addr %s391, 2
        %s393 = smul.addr %s392, 8
        %s394 = scalar_lea.vmem %s5, %s393
        %p395 = scmp.lt.s32.totalorder %s24, 1
        %s396 = scalar_select %p395, %s24, 1
        %s397 = scalar_lea.vmem %s6, %s396
        %s398 = smul.u32 2, %s23
        %p400 = scmp.eq.s32.totalorder %s24, 0
        // Predicated region
        $region49: #{tpu_custom_call.1} parent=47 // pred_check
          %p401 = pneg %p400
        $region50: #{tpu_custom_call.1} parent=47 // pred_check_branch
          %403 = sbr.rel (%p401) target = $region52
        $region51: #{tpu_custom_call.1} parent=47 // pred_region
          %v404 = vld [vmem:[%s368] sm:$0xff]
          %v405 = vld [vmem:[%s368 + $0x8] sm:$0xff]
          %vm406 = vcmask 261120
          %407 = vst.msk [vmem:[#allocation2] sm:$0xff] %vm406, %v404
          %408 = vst.msk [vmem:[#allocation2 + $0x8] sm:$0xff] %vm406, %v405
        $region52: #{tpu_custom_call.1} parent=47 // pred_fallthru
          _
        %v409 = vld [vmem:[#allocation2] sm:$0xff]
        %v410 = vld [vmem:[#allocation2 + $0x8] sm:$0xff]
        %v411 = vld [vmem:[%s394] sm:$0xff]
        %v412 = vld [vmem:[%s394 + $0x8] sm:$0x1]
        %v413 = vld [vmem:[%s397] sm:$0x1]
        %v414 = vld [vmem:[%s374] sm:$0xf]
        %v415 = vld [vmem:[%s374 + $0x4] sm:$0xf]
        %v416 = vld [vmem:[%s374 + $0x8] sm:$0xf]
        %v417 = vld [vmem:[%s374 + $0xc] sm:$0xf]
        %v418 = vpack.c.bf16 %v410, %v409
        %v423 = vunpack.c.l.b16 %v414
        %v424 = vunpack.c.l.b16 %v415
        %v425 = vunpack.c.l.b16 %v416
        %v426 = vunpack.c.l.b16 %v417
        %v427 = vpack.c.b16 %v424, %v423
        %v428 = vpack.c.b16 %v426, %v425
        %vm431 = vcmask 261120
        %v433 = vsel %vm431, %v418, 0
        %435 = vmatprep.subr.bf16.mxu0 0
        %436 = vmatpush1.bf16.msra.mxu0 %v427
        %437 = vmatprep.subr.bf16.mxu0 0
        %438 = vmatpush1.bf16.msra.mxu0 %v428
        %439 = vmatprep.subr.bf16.mxu0 0
        %440 = vmatpush1.bf16.msra.mxu0 0
        %441 = vmatprep.subr.bf16.mxu0 0
        %442 = vmatpush1.bf16.msra.mxu0 0
        %443 = vmatprep.subr.bf16.mxu0 0
        %444 = vmatpush1.bf16.msra.mxu0 0
        %445 = vmatprep.subr.bf16.mxu0 0
        %446 = vmatpush1.bf16.msra.mxu0 0
        %447 = vmatprep.subr.bf16.mxu0 0
        %448 = vmatpush1.bf16.msra.mxu0 0
        %449 = vmatprep.subr.bf16.mxu0 0
        %450 = vmatpush1.bf16.msra.mxu0 0
        %451 = vmatprep.subr.bf16.mxu0 0
        %452 = vmatpush1.bf16.msra.mxu0 0
        %453 = vmatprep.subr.bf16.mxu0 0
        %454 = vmatpush1.bf16.msra.mxu0 0
        %455 = vmatprep.subr.bf16.mxu0 0
        %456 = vmatpush1.bf16.msra.mxu0 0
        %457 = vmatprep.subr.bf16.mxu0 0
        %458 = vmatpush1.bf16.msra.mxu0 0
        %459 = vmatprep.subr.bf16.mxu0 0
        %460 = vmatpush1.bf16.msra.mxu0 0
        %461 = vmatprep.subr.bf16.mxu0 0
        %462 = vmatpush1.bf16.msra.mxu0 0
        %463 = vmatprep.subr.bf16.mxu0 0
        %464 = vmatpush1.bf16.msra.mxu0 0
        %465 = vmatprep.subr.bf16.mxu0 0
        %466 = vmatpush1.bf16.msra.mxu0 0
        %467 = vmatprep.mubr.bf16.mxu0 0
        %468 = vmatmul.mubr.bf16.gmra.mrb[0].mxu0 %v433
        %v469 = vpop.f32.mrb[0].mxu0
        %v470 = vadd.f32 0.0, %v469
        %v471 = vpop.f32.mrb[0].mxu0
        %v472 = vpop.f32.mrb[0].mxu0
        %v473 = vadd.f32 0.0, %v472
        %v474 = vpop.f32.mrb[0].mxu0
        %475 = vdwg.mxu0
        %v476 = vlaneseq
        %v477 = vshrl.u32 %v476, 7
        %v478 = vsub.s32 0, %v477
        %v479 = vrot.slane %v411, %v478
        %v480 = vadd.f32 %v470, %v479
        %v481 = vadd.f32 %v473, %v479
        %v482 = vmul.f32 %v480, 0.35355338
        %v483 = vmul.f32 %v481, 0.35355338
        %v484 = vlaneseq
        %v485 = vshrl.u32 %v484, 7
        %v486 = vsub.s32 1, %v485
        %v487 = vrot.slane %v411, %v486
        %489 = vrot.lane.b32.xlu0 %v487, 32
        %v490 = vpop.permute.xlu0 %489
        %v492 = vadd.f32 %v470, %v490
        %v493 = vadd.f32 %v473, %v490
        %v494 = vlaneseq
        %v495 = vshrl.u32 %v494, 7
        %v496 = vsub.s32 2, %v495
        %v497 = vrot.slane %v411, %v496
        %499 = vrot.lane.b32.xlu0 %v497, 64
        %v500 = vpop.permute.xlu0 %499
        %v502 = vadd.f32 %v470, %v500
        %v503 = vadd.f32 %v473, %v500
        %v504 = vld [vmem:[%s379] sm:$0xf]
        %v505 = vld [vmem:[%s379 + $0x4] sm:$0xf]
        %v506 = vld [vmem:[%s379 + $0x8] sm:$0xf]
        %v507 = vld [vmem:[%s379 + $0xc] sm:$0xf]
        %v508 = vpack.c.bf16 %v482, %v482
        %v509 = vpack.c.bf16 %v483, %v483
        %v510 = vpack.c.bf16 %v492, %v492
        %v511 = vpack.c.bf16 %v493, %v493
        %v512 = vpack.c.bf16 %v502, %v502
        %v513 = vpack.c.bf16 %v503, %v503
        %515 = vrot.lane.b32.xlu0 %v510, 96
        %v516 = vpop.permute.xlu0 %515
        %vm517 = vcmask 64512
        %v519 = vsel %vm517, %v508, 0
        %v522 = vsel %vm517, %v516, 0
        %524 = vmatprep.subr.bf16.mxu0 0
        %525 = vmatpush1.bf16.xpose.msra.mxu0 %v522
        %526 = vmatprep.subr.bf16.mxu0 0
        %527 = vmatpush1.bf16.xpose.msra.mxu0 0
        %528 = vmatprep.subr.bf16.mxu0 0
        %529 = vmatpush1.bf16.xpose.msra.mxu0 0
        %530 = vmatprep.subr.bf16.mxu0 0
        %531 = vmatpush1.bf16.xpose.msra.mxu0 0
        %532 = vmatprep.subr.bf16.mxu0 0
        %533 = vmatpush1.bf16.xpose.msra.mxu0 0
        %534 = vmatprep.subr.bf16.mxu0 0
        %535 = vmatpush1.bf16.xpose.msra.mxu0 0
        %536 = vmatprep.subr.bf16.mxu0 0
        %537 = vmatpush1.bf16.xpose.msra.mxu0 0
        %538 = vmatprep.subr.bf16.mxu0 0
        %539 = vmatpush1.bf16.xpose.msra.mxu0 0
        %540 = vmatprep.subr.bf16.mxu0 0
        %541 = vmatpush1.bf16.xpose.msra.mxu0 0
        %542 = vmatprep.subr.bf16.mxu0 0
        %543 = vmatpush1.bf16.xpose.msra.mxu0 0
        %544 = vmatprep.subr.bf16.mxu0 0
        %545 = vmatpush1.bf16.xpose.msra.mxu0 0
        %546 = vmatprep.subr.bf16.mxu0 0
        %547 = vmatpush1.bf16.xpose.msra.mxu0 0
        %548 = vmatprep.subr.bf16.mxu0 0
        %549 = vmatpush1.bf16.xpose.msra.mxu0 0
        %550 = vmatprep.subr.bf16.mxu0 0
        %551 = vmatpush1.bf16.xpose.msra.mxu0 0
        %552 = vmatprep.subr.bf16.mxu0 0
        %553 = vmatpush1.bf16.xpose.msra.mxu0 0
        %554 = vmatprep.subr.bf16.mxu0 0
        %555 = vmatpush1.bf16.xpose.msra.mxu0 0
        %556 = vmatprep.mubr.bf16.mxu0 0
        %557 = vmatmul.mubr.bf16.gmra.mrb[0].mxu0 %v519
        %v558 = vpop.f32.mrb[0].mxu0
        %v559 = vadd.f32 0.0, %v558
        %v560 = vpop.f32.mrb[0].mxu0
        %v561 = vpop.f32.mrb[0].mxu0
        %v562 = vpop.f32.mrb[0].mxu0
        %563 = vdwg.mxu0
        %565 = vrot.lane.b32.xlu0 %v511, 96
        %v566 = vpop.permute.xlu0 %565
        %v568 = vsel %vm517, %v509, 0
        %v571 = vsel %vm517, %v566, 0
        %573 = vmatprep.subr.bf16.mxu0 0
        %574 = vmatpush1.bf16.xpose.msra.mxu0 %v571
        %575 = vmatprep.subr.bf16.mxu0 0
        %576 = vmatpush1.bf16.xpose.msra.mxu0 0
        %577 = vmatprep.subr.bf16.mxu0 0
        %578 = vmatpush1.bf16.xpose.msra.mxu0 0
        %579 = vmatprep.subr.bf16.mxu0 0
        %580 = vmatpush1.bf16.xpose.msra.mxu0 0
        %581 = vmatprep.subr.bf16.mxu0 0
        %582 = vmatpush1.bf16.xpose.msra.mxu0 0
        %583 = vmatprep.subr.bf16.mxu0 0
        %584 = vmatpush1.bf16.xpose.msra.mxu0 0
        %585 = vmatprep.subr.bf16.mxu0 0
        %586 = vmatpush1.bf16.xpose.msra.mxu0 0
        %587 = vmatprep.subr.bf16.mxu0 0
        %588 = vmatpush1.bf16.xpose.msra.mxu0 0
        %589 = vmatprep.subr.bf16.mxu0 0
        %590 = vmatpush1.bf16.xpose.msra.mxu0 0
        %591 = vmatprep.subr.bf16.mxu0 0
        %592 = vmatpush1.bf16.xpose.msra.mxu0 0
        %593 = vmatprep.subr.bf16.mxu0 0
        %594 = vmatpush1.bf16.xpose.msra.mxu0 0
        %595 = vmatprep.subr.bf16.mxu0 0
        %596 = vmatpush1.bf16.xpose.msra.mxu0 0
        %597 = vmatprep.subr.bf16.mxu0 0
        %598 = vmatpush1.bf16.xpose.msra.mxu0 0
        %599 = vmatprep.subr.bf16.mxu0 0
        %600 = vmatpush1.bf16.xpose.msra.mxu0 0
        %601 = vmatprep.subr.bf16.mxu0 0
        %602 = vmatpush1.bf16.xpose.msra.mxu0 0
        %603 = vmatprep.subr.bf16.mxu0 0
        %604 = vmatpush1.bf16.xpose.msra.mxu0 0
        %605 = vmatprep.mubr.bf16.mxu0 0
        %606 = vmatmul.mubr.bf16.gmra.mrb[0].mxu0 %v568
        %v607 = vpop.f32.mrb[0].mxu0
        %v608 = vadd.f32 0.0, %v607
        %v609 = vpop.f32.mrb[0].mxu0
        %v610 = vpop.f32.mrb[0].mxu0
        %v611 = vpop.f32.mrb[0].mxu0
        %612 = vdwg.mxu0
        %v613 = vsel %vm517, %v559, -inf
        %614 = vmax.xlane.f32.xlu0 %v613
        %v615 = vpop.xlane.xlu0 %614
        %v616 = vsel %vm517, %v608, -inf
        %617 = vmax.xlane.f32.xlu0 %v616
        %v618 = vpop.xlane.xlu0 %617
        %v619 = vsub.f32 %v559, %v615
        %v620 = vsub.f32 %v608, %v618
        %v621 = vmul.f32 %v619, 1.442695
        %v622 = vpow.pop %v621
        %v623 = vmul.f32 %v620, 1.442695
        %v624 = vpow.pop %v623
        %v625 = vsel %vm517, %v622, 0.0
        %626 = vadd.xlane.f32.xlu0 %v625
        %v627 = vpop.xlane.xlu0 %626
        %v628 = vsel %vm517, %v624, 0.0
        %629 = vadd.xlane.f32.xlu0 %v628
        %v630 = vpop.xlane.xlu0 %629
        %v631 = vrcp.pop %v627
        %v632 = vrcp.pop %v630
        %v633 = vmul.f32 %v622, %v631
        %v634 = vmul.f32 %v624, %v632
        %v635 = vpack.c.bf16 %v633, %v633
        %v636 = vpack.c.bf16 %v634, %v634
        %638 = vrot.lane.b32.xlu0 %v512, 64
        %v639 = vpop.permute.xlu0 %638
        %v641 = vsel %vm517, %v635, 0
        %vm643 = vcmask 1043456
        %v645 = vsel %vm643, %v639, 0
        %647 = vmatprep.subr.bf16.mxu0 0
        %648 = vmatpush1.bf16.msra.mxu0 %v645
        %649 = vmatprep.subr.bf16.mxu0 0
        %650 = vmatpush1.bf16.msra.mxu0 0
        %651 = vmatprep.subr.bf16.mxu0 0
        %652 = vmatpush1.bf16.msra.mxu0 0
        %653 = vmatprep.subr.bf16.mxu0 0
        %654 = vmatpush1.bf16.msra.mxu0 0
        %655 = vmatprep.subr.bf16.mxu0 0
        %656 = vmatpush1.bf16.msra.mxu0 0
        %657 = vmatprep.subr.bf16.mxu0 0
        %658 = vmatpush1.bf16.msra.mxu0 0
        %659 = vmatprep.subr.bf16.mxu0 0
        %660 = vmatpush1.bf16.msra.mxu0 0
        %661 = vmatprep.subr.bf16.mxu0 0
        %662 = vmatpush1.bf16.msra.mxu0 0
        %663 = vmatprep.subr.bf16.mxu0 0
        %664 = vmatpush1.bf16.msra.mxu0 0
        %665 = vmatprep.subr.bf16.mxu0 0
        %666 = vmatpush1.bf16.msra.mxu0 0
        %667 = vmatprep.subr.bf16.mxu0 0
        %668 = vmatpush1.bf16.msra.mxu0 0
        %669 = vmatprep.subr.bf16.mxu0 0
        %670 = vmatpush1.bf16.msra.mxu0 0
        %671 = vmatprep.subr.bf16.mxu0 0
        %672 = vmatpush1.bf16.msra.mxu0 0
        %673 = vmatprep.subr.bf16.mxu0 0
        %674 = vmatpush1.bf16.msra.mxu0 0
        %675 = vmatprep.subr.bf16.mxu0 0
        %676 = vmatpush1.bf16.msra.mxu0 0
        %677 = vmatprep.subr.bf16.mxu0 0
        %678 = vmatpush1.bf16.msra.mxu0 0
        %679 = vmatprep.mubr.bf16.mxu0 0
        %680 = vmatmul.mubr.bf16.gmra.mrb[0].mxu0 %v641
        %v681 = vpop.f32.mrb[0].mxu0
        %v682 = vadd.f32 0.0, %v681
        %v683 = vpop.f32.mrb[0].mxu0
        %v684 = vpop.f32.mrb[0].mxu0
        %v685 = vpop.f32.mrb[0].mxu0
        %686 = vdwg.mxu0
        %688 = vrot.lane.b32.xlu0 %v513, 64
        %v689 = vpop.permute.xlu0 %688
        %v691 = vsel %vm517, %v636, 0
        %v694 = vsel %vm643, %v689, 0
        %696 = vmatprep.subr.bf16.mxu0 0
        %697 = vmatpush1.bf16.msra.mxu0 %v694
        %698 = vmatprep.subr.bf16.mxu0 0
        %699 = vmatpush1.bf16.msra.mxu0 0
        %700 = vmatprep.subr.bf16.mxu0 0
        %701 = vmatpush1.bf16.msra.mxu0 0
        %702 = vmatprep.subr.bf16.mxu0 0
        %703 = vmatpush1.bf16.msra.mxu0 0
        %704 = vmatprep.subr.bf16.mxu0 0
        %705 = vmatpush1.bf16.msra.mxu0 0
        %706 = vmatprep.subr.bf16.mxu0 0
        %707 = vmatpush1.bf16.msra.mxu0 0
        %708 = vmatprep.subr.bf16.mxu0 0
        %709 = vmatpush1.bf16.msra.mxu0 0
        %710 = vmatprep.subr.bf16.mxu0 0
        %711 = vmatpush1.bf16.msra.mxu0 0
        %712 = vmatprep.subr.bf16.mxu0 0
        %713 = vmatpush1.bf16.msra.mxu0 0
        %714 = vmatprep.subr.bf16.mxu0 0
        %715 = vmatpush1.bf16.msra.mxu0 0
        %716 = vmatprep.subr.bf16.mxu0 0
        %717 = vmatpush1.bf16.msra.mxu0 0
        %718 = vmatprep.subr.bf16.mxu0 0
        %719 = vmatpush1.bf16.msra.mxu0 0
        %720 = vmatprep.subr.bf16.mxu0 0
        %721 = vmatpush1.bf16.msra.mxu0 0
        %722 = vmatprep.subr.bf16.mxu0 0
        %723 = vmatpush1.bf16.msra.mxu0 0
        %724 = vmatprep.subr.bf16.mxu0 0
        %725 = vmatpush1.bf16.msra.mxu0 0
        %726 = vmatprep.subr.bf16.mxu0 0
        %727 = vmatpush1.bf16.msra.mxu0 0
        %728 = vmatprep.mubr.bf16.mxu0 0
        %729 = vmatmul.mubr.bf16.gmra.mrb[0].mxu0 %v691
        %v730 = vpop.f32.mrb[0].mxu0
        %v731 = vadd.f32 0.0, %v730
        %v732 = vpop.f32.mrb[0].mxu0
        %v733 = vpop.f32.mrb[0].mxu0
        %v734 = vpop.f32.mrb[0].mxu0
        %735 = vdwg.mxu0
        %v736 = vpack.c.bf16 %v731, %v682
        %738 = vrot.lane.b32.xlu0 %v508, 120
        %v739 = vpop.permute.xlu0 %738
        %740 = vrot.lane.b32.xlu0 %v510, 88
        %v741 = vpop.permute.xlu0 %740
        %v743 = vsel %vm517, %v739, 0
        %v746 = vsel %vm517, %v741, 0
        %748 = vmatprep.subr.bf16.mxu0 0
        %749 = vmatpush1.bf16.xpose.msra.mxu0 %v746
        %750 = vmatprep.subr.bf16.mxu0 0
        %751 = vmatpush1.bf16.xpose.msra.mxu0 0
        %752 = vmatprep.subr.bf16.mxu0 0
        %753 = vmatpush1.bf16.xpose.msra.mxu0 0
        %754 = vmatprep.subr.bf16.mxu0 0
        %755 = vmatpush1.bf16.xpose.msra.mxu0 0
        %756 = vmatprep.subr.bf16.mxu0 0
        %757 = vmatpush1.bf16.xpose.msra.mxu0 0
        %758 = vmatprep.subr.bf16.mxu0 0
        %759 = vmatpush1.bf16.xpose.msra.mxu0 0
        %760 = vmatprep.subr.bf16.mxu0 0
        %761 = vmatpush1.bf16.xpose.msra.mxu0 0
        %762 = vmatprep.subr.bf16.mxu0 0
        %763 = vmatpush1.bf16.xpose.msra.mxu0 0
        %764 = vmatprep.subr.bf16.mxu0 0
        %765 = vmatpush1.bf16.xpose.msra.mxu0 0
        %766 = vmatprep.subr.bf16.mxu0 0
        %767 = vmatpush1.bf16.xpose.msra.mxu0 0
        %768 = vmatprep.subr.bf16.mxu0 0
        %769 = vmatpush1.bf16.xpose.msra.mxu0 0
        %770 = vmatprep.subr.bf16.mxu0 0
        %771 = vmatpush1.bf16.xpose.msra.mxu0 0
        %772 = vmatprep.subr.bf16.mxu0 0
        %773 = vmatpush1.bf16.xpose.msra.mxu0 0
        %774 = vmatprep.subr.bf16.mxu0 0
        %775 = vmatpush1.bf16.xpose.msra.mxu0 0
        %776 = vmatprep.subr.bf16.mxu0 0
        %777 = vmatpush1.bf16.xpose.msra.mxu0 0
        %778 = vmatprep.subr.bf16.mxu0 0
        %779 = vmatpush1.bf16.xpose.msra.mxu0 0
        %780 = vmatprep.mubr.bf16.mxu0 0
        %781 = vmatmul.mubr.bf16.gmra.mrb[0].mxu0 %v743
        %v782 = vpop.f32.mrb[0].mxu0
        %v783 = vadd.f32 0.0, %v782
        %v784 = vpop.f32.mrb[0].mxu0
        %v785 = vpop.f32.mrb[0].mxu0
        %v786 = vpop.f32.mrb[0].mxu0
        %787 = vdwg.mxu0
        %789 = vrot.lane.b32.xlu0 %v509, 120
        %v790 = vpop.permute.xlu0 %789
        %791 = vrot.lane.b32.xlu0 %v511, 88
        %v792 = vpop.permute.xlu0 %791
        %v794 = vsel %vm517, %v790, 0
        %v797 = vsel %vm517, %v792, 0
        %799 = vmatprep.subr.bf16.mxu0 0
        %800 = vmatpush1.bf16.xpose.msra.mxu0 %v797
        %801 = vmatprep.subr.bf16.mxu0 0
        %802 = vmatpush1.bf16.xpose.msra.mxu0 0
        %803 = vmatprep.subr.bf16.mxu0 0
        %804 = vmatpush1.bf16.xpose.msra.mxu0 0
        %805 = vmatprep.subr.bf16.mxu0 0
        %806 = vmatpush1.bf16.xpose.msra.mxu0 0
        %807 = vmatprep.subr.bf16.mxu0 0
        %808 = vmatpush1.bf16.xpose.msra.mxu0 0
        %809 = vmatprep.subr.bf16.mxu0 0
        %810 = vmatpush1.bf16.xpose.msra.mxu0 0
        %811 = vmatprep.subr.bf16.mxu0 0
        %812 = vmatpush1.bf16.xpose.msra.mxu0 0
        %813 = vmatprep.subr.bf16.mxu0 0
        %814 = vmatpush1.bf16.xpose.msra.mxu0 0
        %815 = vmatprep.subr.bf16.mxu0 0
        %816 = vmatpush1.bf16.xpose.msra.mxu0 0
        %817 = vmatprep.subr.bf16.mxu0 0
        %818 = vmatpush1.bf16.xpose.msra.mxu0 0
        %819 = vmatprep.subr.bf16.mxu0 0
        %820 = vmatpush1.bf16.xpose.msra.mxu0 0
        %821 = vmatprep.subr.bf16.mxu0 0
        %822 = vmatpush1.bf16.xpose.msra.mxu0 0
        %823 = vmatprep.subr.bf16.mxu0 0
        %824 = vmatpush1.bf16.xpose.msra.mxu0 0
        %825 = vmatprep.subr.bf16.mxu0 0
        %826 = vmatpush1.bf16.xpose.msra.mxu0 0
        %827 = vmatprep.subr.bf16.mxu0 0
        %828 = vmatpush1.bf16.xpose.msra.mxu0 0
        %829 = vmatprep.subr.bf16.mxu0 0
        %830 = vmatpush1.bf16.xpose.msra.mxu0 0
        %831 = vmatprep.mubr.bf16.mxu0 0
        %832 = vmatmul.mubr.bf16.gmra.mrb[0].mxu0 %v794
        %v833 = vpop.f32.mrb[0].mxu0
        %v834 = vadd.f32 0.0, %v833
        %v835 = vpop.f32.mrb[0].mxu0
        %v836 = vpop.f32.mrb[0].mxu0
        %v837 = vpop.f32.mrb[0].mxu0
        %838 = vdwg.mxu0
        %v839 = vsel %vm517, %v783, -inf
        %840 = vmax.xlane.f32.xlu0 %v839
        %v841 = vpop.xlane.xlu0 %840
        %v842 = vsel %vm517, %v834, -inf
        %843 = vmax.xlane.f32.xlu0 %v842
        %v844 = vpop.xlane.xlu0 %843
        %v845 = vsub.f32 %v783, %v841
        %v846 = vsub.f32 %v834, %v844
        %v847 = vmul.f32 %v845, 1.442695
        %v848 = vpow.pop %v847
        %v849 = vmul.f32 %v846, 1.442695
        %v850 = vpow.pop %v849
        %v851 = vsel %vm517, %v848, 0.0
        %852 = vadd.xlane.f32.xlu0 %v851
        %v853 = vpop.xlane.xlu0 %852
        %v854 = vsel %vm517, %v850, 0.0
        %855 = vadd.xlane.f32.xlu0 %v854
        %v856 = vpop.xlane.xlu0 %855
        %v857 = vrcp.pop %v853
        %v858 = vrcp.pop %v856
        %v859 = vmul.f32 %v848, %v857
        %v860 = vmul.f32 %v850, %v858
        %v861 = vpack.c.bf16 %v859, %v859
        %v862 = vpack.c.bf16 %v860, %v860
        %863 = vrot.lane.b32.xlu0 %v512, 56
        %v864 = vpop.permute.xlu0 %863
        %v866 = vsel %vm517, %v861, 0
        %v869 = vsel %vm643, %v864, 0
        %871 = vmatprep.subr.bf16.mxu0 0
        %872 = vmatpush1.bf16.msra.mxu0 %v869
        %873 = vmatprep.subr.bf16.mxu0 0
        %874 = vmatpush1.bf16.msra.mxu0 0
        %875 = vmatprep.subr.bf16.mxu0 0
        %876 = vmatpush1.bf16.msra.mxu0 0
        %877 = vmatprep.subr.bf16.mxu0 0
        %878 = vmatpush1.bf16.msra.mxu0 0
        %879 = vmatprep.subr.bf16.mxu0 0
        %880 = vmatpush1.bf16.msra.mxu0 0
        %881 = vmatprep.subr.bf16.mxu0 0
        %882 = vmatpush1.bf16.msra.mxu0 0
        %883 = vmatprep.subr.bf16.mxu0 0
        %884 = vmatpush1.bf16.msra.mxu0 0
        %885 = vmatprep.subr.bf16.mxu0 0
        %886 = vmatpush1.bf16.msra.mxu0 0
        %887 = vmatprep.subr.bf16.mxu0 0
        %888 = vmatpush1.bf16.msra.mxu0 0
        %889 = vmatprep.subr.bf16.mxu0 0
        %890 = vmatpush1.bf16.msra.mxu0 0
        %891 = vmatprep.subr.bf16.mxu0 0
        %892 = vmatpush1.bf16.msra.mxu0 0
        %893 = vmatprep.subr.bf16.mxu0 0
        %894 = vmatpush1.bf16.msra.mxu0 0
        %895 = vmatprep.subr.bf16.mxu0 0
        %896 = vmatpush1.bf16.msra.mxu0 0
        %897 = vmatprep.subr.bf16.mxu0 0
        %898 = vmatpush1.bf16.msra.mxu0 0
        %899 = vmatprep.subr.bf16.mxu0 0
        %900 = vmatpush1.bf16.msra.mxu0 0
        %901 = vmatprep.subr.bf16.mxu0 0
        %902 = vmatpush1.bf16.msra.mxu0 0
        %903 = vmatprep.mubr.bf16.mxu0 0
        %904 = vmatmul.mubr.bf16.gmra.mrb[0].mxu0 %v866
        %v905 = vpop.f32.mrb[0].mxu0
        %v906 = vadd.f32 0.0, %v905
        %v907 = vpop.f32.mrb[0].mxu0
        %v908 = vpop.f32.mrb[0].mxu0
        %v909 = vpop.f32.mrb[0].mxu0
        %910 = vdwg.mxu0
        %911 = vrot.lane.b32.xlu0 %v513, 56
        %v912 = vpop.permute.xlu0 %911
        %v914 = vsel %vm517, %v862, 0
        %v917 = vsel %vm643, %v912, 0
        %919 = vmatprep.subr.bf16.mxu0 0
        %920 = vmatpush1.bf16.msra.mxu0 %v917
        %921 = vmatprep.subr.bf16.mxu0 0
        %922 = vmatpush1.bf16.msra.mxu0 0
        %923 = vmatprep.subr.bf16.mxu0 0
        %924 = vmatpush1.bf16.msra.mxu0 0
        %925 = vmatprep.subr.bf16.mxu0 0
        %926 = vmatpush1.bf16.msra.mxu0 0
        %927 = vmatprep.subr.bf16.mxu0 0
        %928 = vmatpush1.bf16.msra.mxu0 0
        %929 = vmatprep.subr.bf16.mxu0 0
        %930 = vmatpush1.bf16.msra.mxu0 0
        %931 = vmatprep.subr.bf16.mxu0 0
        %932 = vmatpush1.bf16.msra.mxu0 0
        %933 = vmatprep.subr.bf16.mxu0 0
        %934 = vmatpush1.bf16.msra.mxu0 0
        %935 = vmatprep.subr.bf16.mxu0 0
        %936 = vmatpush1.bf16.msra.mxu0 0
        %937 = vmatprep.subr.bf16.mxu0 0
        %938 = vmatpush1.bf16.msra.mxu0 0
        %939 = vmatprep.subr.bf16.mxu0 0
        %940 = vmatpush1.bf16.msra.mxu0 0
        %941 = vmatprep.subr.bf16.mxu0 0
        %942 = vmatpush1.bf16.msra.mxu0 0
        %943 = vmatprep.subr.bf16.mxu0 0
        %944 = vmatpush1.bf16.msra.mxu0 0
        %945 = vmatprep.subr.bf16.mxu0 0
        %946 = vmatpush1.bf16.msra.mxu0 0
        %947 = vmatprep.subr.bf16.mxu0 0
        %948 = vmatpush1.bf16.msra.mxu0 0
        %949 = vmatprep.subr.bf16.mxu0 0
        %950 = vmatpush1.bf16.msra.mxu0 0
        %951 = vmatprep.mubr.bf16.mxu0 0
        %952 = vmatmul.mubr.bf16.gmra.mrb[0].mxu0 %v914
        %v953 = vpop.f32.mrb[0].mxu0
        %v954 = vadd.f32 0.0, %v953
        %v955 = vpop.f32.mrb[0].mxu0
        %v956 = vpop.f32.mrb[0].mxu0
        %v957 = vpop.f32.mrb[0].mxu0
        %958 = vdwg.mxu0
        %v959 = vpack.c.bf16 %v954, %v906
        %v961 = vsel %vm517, %v959, 0
        %v964 = vsel %vm643, %v505, 0
        %966 = vmatprep.subr.bf16.mxu0 0
        %967 = vmatpush1.bf16.msra.mxu0 %v964
        %968 = vmatprep.subr.bf16.mxu0 0
        %969 = vmatpush1.bf16.msra.mxu0 0
        %970 = vmatprep.subr.bf16.mxu0 0
        %971 = vmatpush1.bf16.msra.mxu0 0
        %972 = vmatprep.subr.bf16.mxu0 0
        %973 = vmatpush1.bf16.msra.mxu0 0
        %974 = vmatprep.subr.bf16.mxu0 0
        %975 = vmatpush1.bf16.msra.mxu0 0
        %976 = vmatprep.subr.bf16.mxu0 0
        %977 = vmatpush1.bf16.msra.mxu0 0
        %978 = vmatprep.subr.bf16.mxu0 0
        %979 = vmatpush1.bf16.msra.mxu0 0
        %980 = vmatprep.subr.bf16.mxu0 0
        %981 = vmatpush1.bf16.msra.mxu0 0
        %982 = vmatprep.subr.bf16.mxu0 0
        %983 = vmatpush1.bf16.msra.mxu0 0
        %984 = vmatprep.subr.bf16.mxu0 0
        %985 = vmatpush1.bf16.msra.mxu0 0
        %986 = vmatprep.subr.bf16.mxu0 0
        %987 = vmatpush1.bf16.msra.mxu0 0
        %988 = vmatprep.subr.bf16.mxu0 0
        %989 = vmatpush1.bf16.msra.mxu0 0
        %990 = vmatprep.subr.bf16.mxu0 0
        %991 = vmatpush1.bf16.msra.mxu0 0
        %992 = vmatprep.subr.bf16.mxu0 0
        %993 = vmatpush1.bf16.msra.mxu0 0
        %994 = vmatprep.subr.bf16.mxu0 0
        %995 = vmatpush1.bf16.msra.mxu0 0
        %996 = vmatprep.subr.bf16.mxu0 0
        %997 = vmatpush1.bf16.msra.mxu0 0
        %998 = vmatprep.mubr.bf16.mxu0 0
        %999 = vmatmul.mubr.bf16.gmra.mrb[0].mxu0 %v961
        %v1000 = vpop.f32.mrb[0].mxu0
        %v1001 = vadd.f32 0.0, %v1000
        %v1002 = vpop.f32.mrb[0].mxu0
        %v1003 = vpop.f32.mrb[0].mxu0
        %v1004 = vadd.f32 0.0, %v1003
        %v1005 = vpop.f32.mrb[0].mxu0
        %1006 = vdwg.mxu0
        %v1008 = vsel %vm517, %v736, 0
        %v1011 = vsel %vm643, %v504, 0
        %1013 = vmatprep.subr.bf16.mxu0 0
        %1014 = vmatpush1.bf16.msra.mxu0 %v1011
        %1015 = vmatprep.subr.bf16.mxu0 0
        %1016 = vmatpush1.bf16.msra.mxu0 0
        %1017 = vmatprep.subr.bf16.mxu0 0
        %1018 = vmatpush1.bf16.msra.mxu0 0
        %1019 = vmatprep.subr.bf16.mxu0 0
        %1020 = vmatpush1.bf16.msra.mxu0 0
        %1021 = vmatprep.subr.bf16.mxu0 0
        %1022 = vmatpush1.bf16.msra.mxu0 0
        %1023 = vmatprep.subr.bf16.mxu0 0
        %1024 = vmatpush1.bf16.msra.mxu0 0
        %1025 = vmatprep.subr.bf16.mxu0 0
        %1026 = vmatpush1.bf16.msra.mxu0 0
        %1027 = vmatprep.subr.bf16.mxu0 0
        %1028 = vmatpush1.bf16.msra.mxu0 0
        %1029 = vmatprep.subr.bf16.mxu0 0
        %1030 = vmatpush1.bf16.msra.mxu0 0
        %1031 = vmatprep.subr.bf16.mxu0 0
        %1032 = vmatpush1.bf16.msra.mxu0 0
        %1033 = vmatprep.subr.bf16.mxu0 0
        %1034 = vmatpush1.bf16.msra.mxu0 0
        %1035 = vmatprep.subr.bf16.mxu0 0
        %1036 = vmatpush1.bf16.msra.mxu0 0
        %1037 = vmatprep.subr.bf16.mxu0 0
        %1038 = vmatpush1.bf16.msra.mxu0 0
        %1039 = vmatprep.subr.bf16.mxu0 0
        %1040 = vmatpush1.bf16.msra.mxu0 0
        %1041 = vmatprep.subr.bf16.mxu0 0
        %1042 = vmatpush1.bf16.msra.mxu0 0
        %1043 = vmatprep.subr.bf16.mxu0 0
        %1044 = vmatpush1.bf16.msra.mxu0 0
        %1045 = vmatprep.mubr.bf16.mxu0 0
        %1046 = vmatmul.mubr.bf16.gmra.mrb[0].mxu0 %v1008
        %v1047 = vpop.f32.mrb[0].mxu0
        %v1048 = vadd.f32 %v1001, %v1047
        %v1049 = vpop.f32.mrb[0].mxu0
        %v1050 = vpop.f32.mrb[0].mxu0
        %v1051 = vadd.f32 %v1004, %v1050
        %v1052 = vpop.f32.mrb[0].mxu0
        %1053 = vdwg.mxu0
        %1054 = vrot.lane.b32.xlu0 %v508, 112
        %v1055 = vpop.permute.xlu0 %1054
        %1056 = vrot.lane.b32.xlu0 %v510, 80
        %v1057 = vpop.permute.xlu0 %1056
        %v1059 = vsel %vm517, %v1055, 0
        %v1062 = vsel %vm517, %v1057, 0
        %1064 = vmatprep.subr.bf16.mxu0 0
        %1065 = vmatpush1.bf16.xpose.msra.mxu0 %v1062
        %1066 = vmatprep.subr.bf16.mxu0 0
        %1067 = vmatpush1.bf16.xpose.msra.mxu0 0
        %1068 = vmatprep.subr.bf16.mxu0 0
        %1069 = vmatpush1.bf16.xpose.msra.mxu0 0
        %1070 = vmatprep.subr.bf16.mxu0 0
        %1071 = vmatpush1.bf16.xpose.msra.mxu0 0
        %1072 = vmatprep.subr.bf16.mxu0 0
        %1073 = vmatpush1.bf16.xpose.msra.mxu0 0
        %1074 = vmatprep.subr.bf16.mxu0 0
        %1075 = vmatpush1.bf16.xpose.msra.mxu0 0
        %1076 = vmatprep.subr.bf16.mxu0 0
        %1077 = vmatpush1.bf16.xpose.msra.mxu0 0
        %1078 = vmatprep.subr.bf16.mxu0 0
        %1079 = vmatpush1.bf16.xpose.msra.mxu0 0
        %1080 = vmatprep.subr.bf16.mxu0 0
        %1081 = vmatpush1.bf16.xpose.msra.mxu0 0
        %1082 = vmatprep.subr.bf16.mxu0 0
        %1083 = vmatpush1.bf16.xpose.msra.mxu0 0
        %1084 = vmatprep.subr.bf16.mxu0 0
        %1085 = vmatpush1.bf16.xpose.msra.mxu0 0
        %1086 = vmatprep.subr.bf16.mxu0 0
        %1087 = vmatpush1.bf16.xpose.msra.mxu0 0
        %1088 = vmatprep.subr.bf16.mxu0 0
        %1089 = vmatpush1.bf16.xpose.msra.mxu0 0
        %1090 = vmatprep.subr.bf16.mxu0 0
        %1091 = vmatpush1.bf16.xpose.msra.mxu0 0
        %1092 = vmatprep.subr.bf16.mxu0 0
        %1093 = vmatpush1.bf16.xpose.msra.mxu0 0
        %1094 = vmatprep.subr.bf16.mxu0 0
        %1095 = vmatpush1.bf16.xpose.msra.mxu0 0
        %1096 = vmatprep.mubr.bf16.mxu0 0
        %1097 = vmatmul.mubr.bf16.gmra.mrb[0].mxu0 %v1059
        %v1098 = vpop.f32.mrb[0].mxu0
        %v1099 = vadd.f32 0.0, %v1098
        %v1100 = vpop.f32.mrb[0].mxu0
        %v1101 = vpop.f32.mrb[0].mxu0
        %v1102 = vpop.f32.mrb[0].mxu0
        %1103 = vdwg.mxu0
        %1104 = vrot.lane.b32.xlu0 %v509, 112
        %v1105 = vpop.permute.xlu0 %1104
        %1106 = vrot.lane.b32.xlu0 %v511, 80
        %v1107 = vpop.permute.xlu0 %1106
        %v1109 = vsel %vm517, %v1105, 0
        %v1112 = vsel %vm517, %v1107, 0
        %1114 = vmatprep.subr.bf16.mxu0 0
        %1115 = vmatpush1.bf16.xpose.msra.mxu0 %v1112
        %1116 = vmatprep.subr.bf16.mxu0 0
        %1117 = vmatpush1.bf16.xpose.msra.mxu0 0
        %1118 = vmatprep.subr.bf16.mxu0 0
        %1119 = vmatpush1.bf16.xpose.msra.mxu0 0
        %1120 = vmatprep.subr.bf16.mxu0 0
        %1121 = vmatpush1.bf16.xpose.msra.mxu0 0
        %1122 = vmatprep.subr.bf16.mxu0 0
        %1123 = vmatpush1.bf16.xpose.msra.mxu0 0
        %1124 = vmatprep.subr.bf16.mxu0 0
        %1125 = vmatpush1.bf16.xpose.msra.mxu0 0
        %1126 = vmatprep.subr.bf16.mxu0 0
        %1127 = vmatpush1.bf16.xpose.msra.mxu0 0
        %1128 = vmatprep.subr.bf16.mxu0 0
        %1129 = vmatpush1.bf16.xpose.msra.mxu0 0
        %1130 = vmatprep.subr.bf16.mxu0 0
        %1131 = vmatpush1.bf16.xpose.msra.mxu0 0
        %1132 = vmatprep.subr.bf16.mxu0 0
        %1133 = vmatpush1.bf16.xpose.msra.mxu0 0
        %1134 = vmatprep.subr.bf16.mxu0 0
        %1135 = vmatpush1.bf16.xpose.msra.mxu0 0
        %1136 = vmatprep.subr.bf16.mxu0 0
        %1137 = vmatpush1.bf16.xpose.msra.mxu0 0
        %1138 = vmatprep.subr.bf16.mxu0 0
        %1139 = vmatpush1.bf16.xpose.msra.mxu0 0
        %1140 = vmatprep.subr.bf16.mxu0 0
        %1141 = vmatpush1.bf16.xpose.msra.mxu0 0
        %1142 = vmatprep.subr.bf16.mxu0 0
        %1143 = vmatpush1.bf16.xpose.msra.mxu0 0
        %1144 = vmatprep.subr.bf16.mxu0 0
        %1145 = vmatpush1.bf16.xpose.msra.mxu0 0
        %1146 = vmatprep.mubr.bf16.mxu0 0
        %1147 = vmatmul.mubr.bf16.gmra.mrb[0].mxu0 %v1109
        %v1148 = vpop.f32.mrb[0].mxu0
        %v1149 = vadd.f32 0.0, %v1148
        %v1150 = vpop.f32.mrb[0].mxu0
        %v1151 = vpop.f32.mrb[0].mxu0
        %v1152 = vpop.f32.mrb[0].mxu0
        %1153 = vdwg.mxu0
        %v1154 = vsel %vm517, %v1099, -inf
        %1155 = vmax.xlane.f32.xlu0 %v1154
        %v1156 = vpop.xlane.xlu0 %1155
        %v1157 = vsel %vm517, %v1149, -inf
        %1158 = vmax.xlane.f32.xlu0 %v1157
        %v1159 = vpop.xlane.xlu0 %1158
        %v1160 = vsub.f32 %v1099, %v1156
        %v1161 = vsub.f32 %v1149, %v1159
        %v1162 = vmul.f32 %v1160, 1.442695
        %v1163 = vpow.pop %v1162
        %v1164 = vmul.f32 %v1161, 1.442695
        %v1165 = vpow.pop %v1164
        %v1166 = vsel %vm517, %v1163, 0.0
        %1167 = vadd.xlane.f32.xlu0 %v1166
        %v1168 = vpop.xlane.xlu0 %1167
        %v1169 = vsel %vm517, %v1165, 0.0
        %1170 = vadd.xlane.f32.xlu0 %v1169
        %v1171 = vpop.xlane.xlu0 %1170
        %v1172 = vrcp.pop %v1168
        %v1173 = vrcp.pop %v1171
        %v1174 = vmul.f32 %v1163, %v1172
        %v1175 = vmul.f32 %v1165, %v1173
        %v1176 = vpack.c.bf16 %v1174, %v1174
        %v1177 = vpack.c.bf16 %v1175, %v1175
        %1178 = vrot.lane.b32.xlu0 %v512, 48
        %v1179 = vpop.permute.xlu0 %1178
        %v1181 = vsel %vm517, %v1176, 0
        %v1184 = vsel %vm643, %v1179, 0
        %1186 = vmatprep.subr.bf16.mxu0 0
        %1187 = vmatpush1.bf16.msra.mxu0 %v1184
        %1188 = vmatprep.subr.bf16.mxu0 0
        %1189 = vmatpush1.bf16.msra.mxu0 0
        %1190 = vmatprep.subr.bf16.mxu0 0
        %1191 = vmatpush1.bf16.msra.mxu0 0
        %1192 = vmatprep.subr.bf16.mxu0 0
        %1193 = vmatpush1.bf16.msra.mxu0 0
        %1194 = vmatprep.subr.bf16.mxu0 0
        %1195 = vmatpush1.bf16.msra.mxu0 0
        %1196 = vmatprep.subr.bf16.mxu0 0
        %1197 = vmatpush1.bf16.msra.mxu0 0
        %1198 = vmatprep.subr.bf16.mxu0 0
        %1199 = vmatpush1.bf16.msra.mxu0 0
        %1200 = vmatprep.subr.bf16.mxu0 0
        %1201 = vmatpush1.bf16.msra.mxu0 0
        %1202 = vmatprep.subr.bf16.mxu0 0
        %1203 = vmatpush1.bf16.msra.mxu0 0
        %1204 = vmatprep.subr.bf16.mxu0 0
        %1205 = vmatpush1.bf16.msra.mxu0 0
        %1206 = vmatprep.subr.bf16.mxu0 0
        %1207 = vmatpush1.bf16.msra.mxu0 0
        %1208 = vmatprep.subr.bf16.mxu0 0
        %1209 = vmatpush1.bf16.msra.mxu0 0
        %1210 = vmatprep.subr.bf16.mxu0 0
        %1211 = vmatpush1.bf16.msra.mxu0 0
        %1212 = vmatprep.subr.bf16.mxu0 0
        %1213 = vmatpush1.bf16.msra.mxu0 0
        %1214 = vmatprep.subr.bf16.mxu0 0
        %1215 = vmatpush1.bf16.msra.mxu0 0
        %1216 = vmatprep.subr.bf16.mxu0 0
        %1217 = vmatpush1.bf16.msra.mxu0 0
        %1218 = vmatprep.mubr.bf16.mxu0 0
        %1219 = vmatmul.mubr.bf16.gmra.mrb[0].mxu0 %v1181
        %v1220 = vpop.f32.mrb[0].mxu0
        %v1221 = vadd.f32 0.0, %v1220
        %v1222 = vpop.f32.mrb[0].mxu0
        %v1223 = vpop.f32.mrb[0].mxu0
        %v1224 = vpop.f32.mrb[0].mxu0
        %1225 = vdwg.mxu0
        %1226 = vrot.lane.b32.xlu0 %v513, 48
        %v1227 = vpop.permute.xlu0 %1226
        %v1229 = vsel %vm517, %v1177, 0
        %v1232 = vsel %vm643, %v1227, 0
        %1234 = vmatprep.subr.bf16.mxu0 0
        %1235 = vmatpush1.bf16.msra.mxu0 %v1232
        %1236 = vmatprep.subr.bf16.mxu0 0
        %1237 = vmatpush1.bf16.msra.mxu0 0
        %1238 = vmatprep.subr.bf16.mxu0 0
        %1239 = vmatpush1.bf16.msra.mxu0 0
        %1240 = vmatprep.subr.bf16.mxu0 0
        %1241 = vmatpush1.bf16.msra.mxu0 0
        %1242 = vmatprep.subr.bf16.mxu0 0
        %1243 = vmatpush1.bf16.msra.mxu0 0
        %1244 = vmatprep.subr.bf16.mxu0 0
        %1245 = vmatpush1.bf16.msra.mxu0 0
        %1246 = vmatprep.subr.bf16.mxu0 0
        %1247 = vmatpush1.bf16.msra.mxu0 0
        %1248 = vmatprep.subr.bf16.mxu0 0
        %1249 = vmatpush1.bf16.msra.mxu0 0
        %1250 = vmatprep.subr.bf16.mxu0 0
        %1251 = vmatpush1.bf16.msra.mxu0 0
        %1252 = vmatprep.subr.bf16.mxu0 0
        %1253 = vmatpush1.bf16.msra.mxu0 0
        %1254 = vmatprep.subr.bf16.mxu0 0
        %1255 = vmatpush1.bf16.msra.mxu0 0
        %1256 = vmatprep.subr.bf16.mxu0 0
        %1257 = vmatpush1.bf16.msra.mxu0 0
        %1258 = vmatprep.subr.bf16.mxu0 0
        %1259 = vmatpush1.bf16.msra.mxu0 0
        %1260 = vmatprep.subr.bf16.mxu0 0
        %1261 = vmatpush1.bf16.msra.mxu0 0
        %1262 = vmatprep.subr.bf16.mxu0 0
        %1263 = vmatpush1.bf16.msra.mxu0 0
        %1264 = vmatprep.subr.bf16.mxu0 0
        %1265 = vmatpush1.bf16.msra.mxu0 0
        %1266 = vmatprep.mubr.bf16.mxu0 0
        %1267 = vmatmul.mubr.bf16.gmra.mrb[0].mxu0 %v1229
        %v1268 = vpop.f32.mrb[0].mxu0
        %v1269 = vadd.f32 0.0, %v1268
        %v1270 = vpop.f32.mrb[0].mxu0
        %v1271 = vpop.f32.mrb[0].mxu0
        %v1272 = vpop.f32.mrb[0].mxu0
        %1273 = vdwg.mxu0
        %v1274 = vpack.c.bf16 %v1269, %v1221
        %v1276 = vsel %vm517, %v1274, 0
        %v1279 = vsel %vm643, %v506, 0
        %1281 = vmatprep.subr.bf16.mxu0 0
        %1282 = vmatpush1.bf16.msra.mxu0 %v1279
        %1283 = vmatprep.subr.bf16.mxu0 0
        %1284 = vmatpush1.bf16.msra.mxu0 0
        %1285 = vmatprep.subr.bf16.mxu0 0
        %1286 = vmatpush1.bf16.msra.mxu0 0
        %1287 = vmatprep.subr.bf16.mxu0 0
        %1288 = vmatpush1.bf16.msra.mxu0 0
        %1289 = vmatprep.subr.bf16.mxu0 0
        %1290 = vmatpush1.bf16.msra.mxu0 0
        %1291 = vmatprep.subr.bf16.mxu0 0
        %1292 = vmatpush1.bf16.msra.mxu0 0
        %1293 = vmatprep.subr.bf16.mxu0 0
        %1294 = vmatpush1.bf16.msra.mxu0 0
        %1295 = vmatprep.subr.bf16.mxu0 0
        %1296 = vmatpush1.bf16.msra.mxu0 0
        %1297 = vmatprep.subr.bf16.mxu0 0
        %1298 = vmatpush1.bf16.msra.mxu0 0
        %1299 = vmatprep.subr.bf16.mxu0 0
        %1300 = vmatpush1.bf16.msra.mxu0 0
        %1301 = vmatprep.subr.bf16.mxu0 0
        %1302 = vmatpush1.bf16.msra.mxu0 0
        %1303 = vmatprep.subr.bf16.mxu0 0
        %1304 = vmatpush1.bf16.msra.mxu0 0
        %1305 = vmatprep.subr.bf16.mxu0 0
        %1306 = vmatpush1.bf16.msra.mxu0 0
        %1307 = vmatprep.subr.bf16.mxu0 0
        %1308 = vmatpush1.bf16.msra.mxu0 0
        %1309 = vmatprep.subr.bf16.mxu0 0
        %1310 = vmatpush1.bf16.msra.mxu0 0
        %1311 = vmatprep.subr.bf16.mxu0 0
        %1312 = vmatpush1.bf16.msra.mxu0 0
        %1313 = vmatprep.mubr.bf16.mxu0 0
        %1314 = vmatmul.mubr.bf16.gmra.mrb[0].mxu0 %v1276
        %v1315 = vpop.f32.mrb[0].mxu0
        %v1316 = vadd.f32 0.0, %v1315
        %v1317 = vpop.f32.mrb[0].mxu0
        %v1318 = vpop.f32.mrb[0].mxu0
        %v1319 = vadd.f32 0.0, %v1318
        %v1320 = vpop.f32.mrb[0].mxu0
        %1321 = vdwg.mxu0
        %v1322 = vadd.f32 %v1048, %v1316
        %v1323 = vadd.f32 %v1051, %v1319
        %1324 = vrot.lane.b32.xlu0 %v508, 104
        %v1325 = vpop.permute.xlu0 %1324
        %1326 = vrot.lane.b32.xlu0 %v510, 72
        %v1327 = vpop.permute.xlu0 %1326
        %v1329 = vsel %vm517, %v1325, 0
        %v1332 = vsel %vm517, %v1327, 0
        %1334 = vmatprep.subr.bf16.mxu0 0
        %1335 = vmatpush1.bf16.xpose.msra.mxu0 %v1332
        %1336 = vmatprep.subr.bf16.mxu0 0
        %1337 = vmatpush1.bf16.xpose.msra.mxu0 0
        %1338 = vmatprep.subr.bf16.mxu0 0
        %1339 = vmatpush1.bf16.xpose.msra.mxu0 0
        %1340 = vmatprep.subr.bf16.mxu0 0
        %1341 = vmatpush1.bf16.xpose.msra.mxu0 0
        %1342 = vmatprep.subr.bf16.mxu0 0
        %1343 = vmatpush1.bf16.xpose.msra.mxu0 0
        %1344 = vmatprep.subr.bf16.mxu0 0
        %1345 = vmatpush1.bf16.xpose.msra.mxu0 0
        %1346 = vmatprep.subr.bf16.mxu0 0
        %1347 = vmatpush1.bf16.xpose.msra.mxu0 0
        %1348 = vmatprep.subr.bf16.mxu0 0
        %1349 = vmatpush1.bf16.xpose.msra.mxu0 0
        %1350 = vmatprep.subr.bf16.mxu0 0
        %1351 = vmatpush1.bf16.xpose.msra.mxu0 0
        %1352 = vmatprep.subr.bf16.mxu0 0
        %1353 = vmatpush1.bf16.xpose.msra.mxu0 0
        %1354 = vmatprep.subr.bf16.mxu0 0
        %1355 = vmatpush1.bf16.xpose.msra.mxu0 0
        %1356 = vmatprep.subr.bf16.mxu0 0
        %1357 = vmatpush1.bf16.xpose.msra.mxu0 0
        %1358 = vmatprep.subr.bf16.mxu0 0
        %1359 = vmatpush1.bf16.xpose.msra.mxu0 0
        %1360 = vmatprep.subr.bf16.mxu0 0
        %1361 = vmatpush1.bf16.xpose.msra.mxu0 0
        %1362 = vmatprep.subr.bf16.mxu0 0
        %1363 = vmatpush1.bf16.xpose.msra.mxu0 0
        %1364 = vmatprep.subr.bf16.mxu0 0
        %1365 = vmatpush1.bf16.xpose.msra.mxu0 0
        %1366 = vmatprep.mubr.bf16.mxu0 0
        %1367 = vmatmul.mubr.bf16.gmra.mrb[0].mxu0 %v1329
        %v1368 = vpop.f32.mrb[0].mxu0
        %v1369 = vadd.f32 0.0, %v1368
        %v1370 = vpop.f32.mrb[0].mxu0
        %v1371 = vpop.f32.mrb[0].mxu0
        %v1372 = vpop.f32.mrb[0].mxu0
        %1373 = vdwg.mxu0
        %1374 = vrot.lane.b32.xlu0 %v509, 104
        %v1375 = vpop.permute.xlu0 %1374
        %1376 = vrot.lane.b32.xlu0 %v511, 72
        %v1377 = vpop.permute.xlu0 %1376
        %v1379 = vsel %vm517, %v1375, 0
        %v1382 = vsel %vm517, %v1377, 0
        %1384 = vmatprep.subr.bf16.mxu0 0
        %1385 = vmatpush1.bf16.xpose.msra.mxu0 %v1382
        %1386 = vmatprep.subr.bf16.mxu0 0
        %1387 = vmatpush1.bf16.xpose.msra.mxu0 0
        %1388 = vmatprep.subr.bf16.mxu0 0
        %1389 = vmatpush1.bf16.xpose.msra.mxu0 0
        %1390 = vmatprep.subr.bf16.mxu0 0
        %1391 = vmatpush1.bf16.xpose.msra.mxu0 0
        %1392 = vmatprep.subr.bf16.mxu0 0
        %1393 = vmatpush1.bf16.xpose.msra.mxu0 0
        %1394 = vmatprep.subr.bf16.mxu0 0
        %1395 = vmatpush1.bf16.xpose.msra.mxu0 0
        %1396 = vmatprep.subr.bf16.mxu0 0
        %1397 = vmatpush1.bf16.xpose.msra.mxu0 0
        %1398 = vmatprep.subr.bf16.mxu0 0
        %1399 = vmatpush1.bf16.xpose.msra.mxu0 0
        %1400 = vmatprep.subr.bf16.mxu0 0
        %1401 = vmatpush1.bf16.xpose.msra.mxu0 0
        %1402 = vmatprep.subr.bf16.mxu0 0
        %1403 = vmatpush1.bf16.xpose.msra.mxu0 0
        %1404 = vmatprep.subr.bf16.mxu0 0
        %1405 = vmatpush1.bf16.xpose.msra.mxu0 0
        %1406 = vmatprep.subr.bf16.mxu0 0
        %1407 = vmatpush1.bf16.xpose.msra.mxu0 0
        %1408 = vmatprep.subr.bf16.mxu0 0
        %1409 = vmatpush1.bf16.xpose.msra.mxu0 0
        %1410 = vmatprep.subr.bf16.mxu0 0
        %1411 = vmatpush1.bf16.xpose.msra.mxu0 0
        %1412 = vmatprep.subr.bf16.mxu0 0
        %1413 = vmatpush1.bf16.xpose.msra.mxu0 0
        %1414 = vmatprep.subr.bf16.mxu0 0
        %1415 = vmatpush1.bf16.xpose.msra.mxu0 0
        %1416 = vmatprep.mubr.bf16.mxu0 0
        %1417 = vmatmul.mubr.bf16.gmra.mrb[0].mxu0 %v1379
        %v1418 = vpop.f32.mrb[0].mxu0
        %v1419 = vadd.f32 0.0, %v1418
        %v1420 = vpop.f32.mrb[0].mxu0
        %v1421 = vpop.f32.mrb[0].mxu0
        %v1422 = vpop.f32.mrb[0].mxu0
        %1423 = vdwg.mxu0
        %v1424 = vsel %vm517, %v1369, -inf
        %1425 = vmax.xlane.f32.xlu0 %v1424
        %v1426 = vpop.xlane.xlu0 %1425
        %v1427 = vsel %vm517, %v1419, -inf
        %1428 = vmax.xlane.f32.xlu0 %v1427
        %v1429 = vpop.xlane.xlu0 %1428
        %v1430 = vsub.f32 %v1369, %v1426
        %v1431 = vsub.f32 %v1419, %v1429
        %v1432 = vmul.f32 %v1430, 1.442695
        %v1433 = vpow.pop %v1432
        %v1434 = vmul.f32 %v1431, 1.442695
        %v1435 = vpow.pop %v1434
        %v1436 = vsel %vm517, %v1433, 0.0
        %1437 = vadd.xlane.f32.xlu0 %v1436
        %v1438 = vpop.xlane.xlu0 %1437
        %v1439 = vsel %vm517, %v1435, 0.0
        %1440 = vadd.xlane.f32.xlu0 %v1439
        %v1441 = vpop.xlane.xlu0 %1440
        %v1442 = vrcp.pop %v1438
        %v1443 = vrcp.pop %v1441
        %v1444 = vmul.f32 %v1433, %v1442
        %v1445 = vmul.f32 %v1435, %v1443
        %v1446 = vpack.c.bf16 %v1444, %v1444
        %v1447 = vpack.c.bf16 %v1445, %v1445
        %1448 = vrot.lane.b32.xlu0 %v512, 40
        %v1449 = vpop.permute.xlu0 %1448
        %v1451 = vsel %vm517, %v1446, 0
        %v1454 = vsel %vm643, %v1449, 0
        %1456 = vmatprep.subr.bf16.mxu0 0
        %1457 = vmatpush1.bf16.msra.mxu0 %v1454
        %1458 = vmatprep.subr.bf16.mxu0 0
        %1459 = vmatpush1.bf16.msra.mxu0 0
        %1460 = vmatprep.subr.bf16.mxu0 0
        %1461 = vmatpush1.bf16.msra.mxu0 0
        %1462 = vmatprep.subr.bf16.mxu0 0
        %1463 = vmatpush1.bf16.msra.mxu0 0
        %1464 = vmatprep.subr.bf16.mxu0 0
        %1465 = vmatpush1.bf16.msra.mxu0 0
        %1466 = vmatprep.subr.bf16.mxu0 0
        %1467 = vmatpush1.bf16.msra.mxu0 0
        %1468 = vmatprep.subr.bf16.mxu0 0
        %1469 = vmatpush1.bf16.msra.mxu0 0
        %1470 = vmatprep.subr.bf16.mxu0 0
        %1471 = vmatpush1.bf16.msra.mxu0 0
        %1472 = vmatprep.subr.bf16.mxu0 0
        %1473 = vmatpush1.bf16.msra.mxu0 0
        %1474 = vmatprep.subr.bf16.mxu0 0
        %1475 = vmatpush1.bf16.msra.mxu0 0
        %1476 = vmatprep.subr.bf16.mxu0 0
        %1477 = vmatpush1.bf16.msra.mxu0 0
        %1478 = vmatprep.subr.bf16.mxu0 0
        %1479 = vmatpush1.bf16.msra.mxu0 0
        %1480 = vmatprep.subr.bf16.mxu0 0
        %1481 = vmatpush1.bf16.msra.mxu0 0
        %1482 = vmatprep.subr.bf16.mxu0 0
        %1483 = vmatpush1.bf16.msra.mxu0 0
        %1484 = vmatprep.subr.bf16.mxu0 0
        %1485 = vmatpush1.bf16.msra.mxu0 0
        %1486 = vmatprep.subr.bf16.mxu0 0
        %1487 = vmatpush1.bf16.msra.mxu0 0
        %1488 = vmatprep.mubr.bf16.mxu0 0
        %1489 = vmatmul.mubr.bf16.gmra.mrb[0].mxu0 %v1451
        %v1490 = vpop.f32.mrb[0].mxu0
        %v1491 = vadd.f32 0.0, %v1490
        %v1492 = vpop.f32.mrb[0].mxu0
        %v1493 = vpop.f32.mrb[0].mxu0
        %v1494 = vpop.f32.mrb[0].mxu0
        %1495 = vdwg.mxu0
        %1496 = vrot.lane.b32.xlu0 %v513, 40
        %v1497 = vpop.permute.xlu0 %1496
        %v1499 = vsel %vm517, %v1447, 0
        %v1502 = vsel %vm643, %v1497, 0
        %1504 = vmatprep.subr.bf16.mxu0 0
        %1505 = vmatpush1.bf16.msra.mxu0 %v1502
        %1506 = vmatprep.subr.bf16.mxu0 0
        %1507 = vmatpush1.bf16.msra.mxu0 0
        %1508 = vmatprep.subr.bf16.mxu0 0
        %1509 = vmatpush1.bf16.msra.mxu0 0
        %1510 = vmatprep.subr.bf16.mxu0 0
        %1511 = vmatpush1.bf16.msra.mxu0 0
        %1512 = vmatprep.subr.bf16.mxu0 0
        %1513 = vmatpush1.bf16.msra.mxu0 0
        %1514 = vmatprep.subr.bf16.mxu0 0
        %1515 = vmatpush1.bf16.msra.mxu0 0
        %1516 = vmatprep.subr.bf16.mxu0 0
        %1517 = vmatpush1.bf16.msra.mxu0 0
        %1518 = vmatprep.subr.bf16.mxu0 0
        %1519 = vmatpush1.bf16.msra.mxu0 0
        %1520 = vmatprep.subr.bf16.mxu0 0
        %1521 = vmatpush1.bf16.msra.mxu0 0
        %1522 = vmatprep.subr.bf16.mxu0 0
        %1523 = vmatpush1.bf16.msra.mxu0 0
        %1524 = vmatprep.subr.bf16.mxu0 0
        %1525 = vmatpush1.bf16.msra.mxu0 0
        %1526 = vmatprep.subr.bf16.mxu0 0
        %1527 = vmatpush1.bf16.msra.mxu0 0
        %1528 = vmatprep.subr.bf16.mxu0 0
        %1529 = vmatpush1.bf16.msra.mxu0 0
        %1530 = vmatprep.subr.bf16.mxu0 0
        %1531 = vmatpush1.bf16.msra.mxu0 0
        %1532 = vmatprep.subr.bf16.mxu0 0
        %1533 = vmatpush1.bf16.msra.mxu0 0
        %1534 = vmatprep.subr.bf16.mxu0 0
        %1535 = vmatpush1.bf16.msra.mxu0 0
        %1536 = vmatprep.mubr.bf16.mxu0 0
        %1537 = vmatmul.mubr.bf16.gmra.mrb[0].mxu0 %v1499
        %v1538 = vpop.f32.mrb[0].mxu0
        %v1539 = vadd.f32 0.0, %v1538
        %v1540 = vpop.f32.mrb[0].mxu0
        %v1541 = vpop.f32.mrb[0].mxu0
        %v1542 = vpop.f32.mrb[0].mxu0
        %1543 = vdwg.mxu0
        %v1544 = vpack.c.bf16 %v1539, %v1491
        %v1546 = vsel %vm517, %v1544, 0
        %v1549 = vsel %vm643, %v507, 0
        %1551 = vmatprep.subr.bf16.mxu0 0
        %1552 = vmatpush1.bf16.msra.mxu0 %v1549
        %1553 = vmatprep.subr.bf16.mxu0 0
        %1554 = vmatpush1.bf16.msra.mxu0 0
        %1555 = vmatprep.subr.bf16.mxu0 0
        %1556 = vmatpush1.bf16.msra.mxu0 0
        %1557 = vmatprep.subr.bf16.mxu0 0
        %1558 = vmatpush1.bf16.msra.mxu0 0
        %1559 = vmatprep.subr.bf16.mxu0 0
        %1560 = vmatpush1.bf16.msra.mxu0 0
        %1561 = vmatprep.subr.bf16.mxu0 0
        %1562 = vmatpush1.bf16.msra.mxu0 0
        %1563 = vmatprep.subr.bf16.mxu0 0
        %1564 = vmatpush1.bf16.msra.mxu0 0
        %1565 = vmatprep.subr.bf16.mxu0 0
        %1566 = vmatpush1.bf16.msra.mxu0 0
        %1567 = vmatprep.subr.bf16.mxu0 0
        %1568 = vmatpush1.bf16.msra.mxu0 0
        %1569 = vmatprep.subr.bf16.mxu0 0
        %1570 = vmatpush1.bf16.msra.mxu0 0
        %1571 = vmatprep.subr.bf16.mxu0 0
        %1572 = vmatpush1.bf16.msra.mxu0 0
        %1573 = vmatprep.subr.bf16.mxu0 0
        %1574 = vmatpush1.bf16.msra.mxu0 0
        %1575 = vmatprep.subr.bf16.mxu0 0
        %1576 = vmatpush1.bf16.msra.mxu0 0
        %1577 = vmatprep.subr.bf16.mxu0 0
        %1578 = vmatpush1.bf16.msra.mxu0 0
        %1579 = vmatprep.subr.bf16.mxu0 0
        %1580 = vmatpush1.bf16.msra.mxu0 0
        %1581 = vmatprep.subr.bf16.mxu0 0
        %1582 = vmatpush1.bf16.msra.mxu0 0
        %1583 = vmatprep.mubr.bf16.mxu0 0
        %1584 = vmatmul.mubr.bf16.gmra.mrb[0].mxu0 %v1546
        %v1585 = vpop.f32.mrb[0].mxu0
        %v1586 = vadd.f32 0.0, %v1585
        %v1587 = vpop.f32.mrb[0].mxu0
        %v1588 = vpop.f32.mrb[0].mxu0
        %v1589 = vadd.f32 0.0, %v1588
        %v1590 = vpop.f32.mrb[0].mxu0
        %1591 = vdwg.mxu0
        %v1592 = vadd.f32 %v1322, %v1586
        %v1593 = vadd.f32 %v1323, %v1589
        %v1594 = vlaneseq
        %v1595 = vshrl.u32 %v1594, 7
        %v1596 = vsub.s32 3, %v1595
        %v1597 = vrot.slane %v411, %v1596
        %v1598 = vadd.f32 %v1592, %v1597
        %v1599 = vadd.f32 %v1593, %v1597
        %v1600 = vadd.f32 %v409, %v1598
        %v1601 = vadd.f32 %v410, %v1599
        %v1602 = vsel %vm431, %v1600, 0.0
        %1603 = vadd.xlane.f32.xlu0 %v1602
        %v1604 = vpop.xlane.xlu0 %1603
        %v1605 = vsel %vm431, %v1601, 0.0
        %1606 = vadd.xlane.f32.xlu0 %v1605
        %v1607 = vpop.xlane.xlu0 %1606
        %v1608 = vrcp.pop 32.0
        %v1609 = vmul.f32 %v1604, %v1608
        %v1610 = vmul.f32 %v1607, %v1608
        %v1611 = vsub.f32 %v1600, %v1609
        %v1612 = vsub.f32 %v1601, %v1610
        %v1613 = vmul.f32 %v1611, %v1611
        %v1614 = vmul.f32 %v1612, %v1612
        %v1615 = vsel %vm431, %v1613, 0.0
        %1616 = vadd.xlane.f32.xlu0 %v1615
        %v1617 = vpop.xlane.xlu0 %1616
        %v1618 = vsel %vm431, %v1614, 0.0
        %1619 = vadd.xlane.f32.xlu0 %v1618
        %v1620 = vpop.xlane.xlu0 %1619
        %v1621 = vmul.f32 %v1617, %v1608
        %v1622 = vmul.f32 %v1620, %v1608
        %v1623 = vadd.f32 %v1621, 1e-05
        %v1624 = vadd.f32 %v1622, 1e-05
        %v1625 = vrsqrt.pop %v1623
        %v1626 = vrsqrt.pop %v1624
        %v1627 = vmul.f32 %v1611, %v1625
        %v1628 = vmul.f32 %v1612, %v1626
        %v1629 = vlaneseq
        %v1630 = vshrl.u32 %v1629, 7
        %v1631 = vsub.s32 4, %v1630
        %v1632 = vrot.slane %v411, %v1631
        %v1633 = vmul.f32 %v1627, %v1632
        %v1634 = vmul.f32 %v1628, %v1632
        %v1635 = vlaneseq
        %v1636 = vshrl.u32 %v1635, 7
        %v1637 = vsub.s32 5, %v1636
        %v1638 = vrot.slane %v411, %v1637
        %v1639 = vadd.f32 %v1633, %v1638
        %v1640 = vadd.f32 %v1634, %v1638
        %v1641 = vld [vmem:[%s384] sm:$0xf]
        %v1642 = vld [vmem:[%s384 + $0x4] sm:$0xf]
        %v1643 = vld [vmem:[%s384 + $0x8] sm:$0xf]
        %v1644 = vld [vmem:[%s384 + $0xc] sm:$0xf]
        %v1645 = vpack.c.bf16 %v1640, %v1639
        %v1647 = vlaneseq
        %v1648 = vshrl.u32 %v1647, 7
        %v1649 = vsub.s32 0, %v1648
        %v1650 = vrot.slane %v413, %v1649
        %v1656 = vunpack.c.l.b16 %v1641
        %v1657 = vunpack.c.l.b16 %v1642
        %v1658 = vunpack.c.l.b16 %v1643
        %v1659 = vunpack.c.l.b16 %v1644
        %v1660 = vpack.c.b16 %v1657, %v1656
        %v1661 = vpack.c.b16 %v1659, %v1658
        %v1665 = vsel %vm431, %v1645, 0
        %1667 = vmatprep.subr.bf16.mxu0 0
        %1668 = vmatpush1.bf16.msra.mxu0 %v1660
        %1669 = vmatprep.subr.bf16.mxu0 0
        %1670 = vmatpush1.bf16.msra.mxu0 %v1661
        %1671 = vmatprep.subr.bf16.mxu0 0
        %1672 = vmatpush1.bf16.msra.mxu0 0
        %1673 = vmatprep.subr.bf16.mxu0 0
        %1674 = vmatpush1.bf16.msra.mxu0 0
        %1675 = vmatprep.subr.bf16.mxu0 0
        %1676 = vmatpush1.bf16.msra.mxu0 0
        %1677 = vmatprep.subr.bf16.mxu0 0
        %1678 = vmatpush1.bf16.msra.mxu0 0
        %1679 = vmatprep.subr.bf16.mxu0 0
        %1680 = vmatpush1.bf16.msra.mxu0 0
        %1681 = vmatprep.subr.bf16.mxu0 0
        %1682 = vmatpush1.bf16.msra.mxu0 0
        %1683 = vmatprep.subr.bf16.mxu0 0
        %1684 = vmatpush1.bf16.msra.mxu0 0
        %1685 = vmatprep.subr.bf16.mxu0 0
        %1686 = vmatpush1.bf16.msra.mxu0 0
        %1687 = vmatprep.subr.bf16.mxu0 0
        %1688 = vmatpush1.bf16.msra.mxu0 0
        %1689 = vmatprep.subr.bf16.mxu0 0
        %1690 = vmatpush1.bf16.msra.mxu0 0
        %1691 = vmatprep.subr.bf16.mxu0 0
        %1692 = vmatpush1.bf16.msra.mxu0 0
        %1693 = vmatprep.subr.bf16.mxu0 0
        %1694 = vmatpush1.bf16.msra.mxu0 0
        %1695 = vmatprep.subr.bf16.mxu0 0
        %1696 = vmatpush1.bf16.msra.mxu0 0
        %1697 = vmatprep.subr.bf16.mxu0 0
        %1698 = vmatpush1.bf16.msra.mxu0 0
        %1699 = vmatprep.mubr.bf16.mxu0 0
        %1700 = vmatmul.mubr.bf16.gmra.mrb[0].mxu0 %v1665
        %v1701 = vpop.f32.mrb[0].mxu0
        %v1702 = vadd.f32 %v1650, %v1701
        %v1703 = vpop.f32.mrb[0].mxu0
        %v1704 = vpop.f32.mrb[0].mxu0
        %v1705 = vadd.f32 %v1650, %v1704
        %v1706 = vpop.f32.mrb[0].mxu0
        %1707 = vdwg.mxu0
        %v1708 = vmax.f32 %v1702, 0.0
        %v1709 = vmax.f32 %v1705, 0.0
        %v1710 = vld [vmem:[%s389] sm:$0xf]
        %v1711 = vld [vmem:[%s389 + $0x4] sm:$0xf]
        %v1712 = vld [vmem:[%s389 + $0x8] sm:$0xf]
        %v1713 = vld [vmem:[%s389 + $0xc] sm:$0xf]
        %v1714 = vld [vmem:[%s389 + $0x10] sm:$0xf]
        %v1715 = vld [vmem:[%s389 + $0x14] sm:$0xf]
        %v1716 = vld [vmem:[%s389 + $0x18] sm:$0xf]
        %v1717 = vld [vmem:[%s389 + $0x1c] sm:$0xf]
        %v1718 = vpack.c.bf16 %v1709, %v1708
        %v1719 = vlaneseq
        %v1720 = vshrl.u32 %v1719, 7
        %v1721 = vsub.s32 6, %v1720
        %v1722 = vrot.slane %v411, %v1721
        %v1731 = vunpack.c.l.b16 %v1710
        %v1732 = vunpack.c.l.b16 %v1711
        %v1733 = vunpack.c.l.b16 %v1712
        %v1734 = vunpack.c.l.b16 %v1713
        %v1735 = vunpack.c.l.b16 %v1714
        %v1736 = vunpack.c.l.b16 %v1715
        %v1737 = vunpack.c.l.b16 %v1716
        %v1738 = vunpack.c.l.b16 %v1717
        %v1739 = vpack.c.b16 %v1732, %v1731
        %v1740 = vpack.c.b16 %v1734, %v1733
        %v1741 = vpack.c.b16 %v1736, %v1735
        %v1742 = vpack.c.b16 %v1738, %v1737
        %vm1747 = vcmask 523264
        %v1749 = vsel %vm1747, %v1718, 0
        %1751 = vmatprep.subr.bf16.mxu0 0
        %1752 = vmatpush1.bf16.msra.mxu0 %v1739
        %1753 = vmatprep.subr.bf16.mxu0 0
        %1754 = vmatpush1.bf16.msra.mxu0 %v1740
        %1755 = vmatprep.subr.bf16.mxu0 0
        %1756 = vmatpush1.bf16.msra.mxu0 %v1741
        %1757 = vmatprep.subr.bf16.mxu0 0
        %1758 = vmatpush1.bf16.msra.mxu0 %v1742
        %1759 = vmatprep.subr.bf16.mxu0 0
        %1760 = vmatpush1.bf16.msra.mxu0 0
        %1761 = vmatprep.subr.bf16.mxu0 0
        %1762 = vmatpush1.bf16.msra.mxu0 0
        %1763 = vmatprep.subr.bf16.mxu0 0
        %1764 = vmatpush1.bf16.msra.mxu0 0
        %1765 = vmatprep.subr.bf16.mxu0 0
        %1766 = vmatpush1.bf16.msra.mxu0 0
        %1767 = vmatprep.subr.bf16.mxu0 0
        %1768 = vmatpush1.bf16.msra.mxu0 0
        %1769 = vmatprep.subr.bf16.mxu0 0
        %1770 = vmatpush1.bf16.msra.mxu0 0
        %1771 = vmatprep.subr.bf16.mxu0 0
        %1772 = vmatpush1.bf16.msra.mxu0 0
        %1773 = vmatprep.subr.bf16.mxu0 0
        %1774 = vmatpush1.bf16.msra.mxu0 0
        %1775 = vmatprep.subr.bf16.mxu0 0
        %1776 = vmatpush1.bf16.msra.mxu0 0
        %1777 = vmatprep.subr.bf16.mxu0 0
        %1778 = vmatpush1.bf16.msra.mxu0 0
        %1779 = vmatprep.subr.bf16.mxu0 0
        %1780 = vmatpush1.bf16.msra.mxu0 0
        %1781 = vmatprep.subr.bf16.mxu0 0
        %1782 = vmatpush1.bf16.msra.mxu0 0
        %1783 = vmatprep.mubr.bf16.mxu0 0
        %1784 = vmatmul.mubr.bf16.gmra.mrb[0].mxu0 %v1749
        %v1785 = vpop.f32.mrb[0].mxu0
        %v1786 = vadd.f32 %v1722, %v1785
        %v1787 = vpop.f32.mrb[0].mxu0
        %v1788 = vpop.f32.mrb[0].mxu0
        %v1789 = vadd.f32 %v1722, %v1788
        %v1790 = vpop.f32.mrb[0].mxu0
        %1791 = vdwg.mxu0
        %v1792 = vadd.f32 %v1639, %v1786
        %v1793 = vadd.f32 %v1640, %v1789
        %v1794 = vsel %vm431, %v1792, 0.0
        %1795 = vadd.xlane.f32.xlu0 %v1794
        %v1796 = vpop.xlane.xlu0 %1795
        %v1797 = vsel %vm431, %v1793, 0.0
        %1798 = vadd.xlane.f32.xlu0 %v1797
        %v1799 = vpop.xlane.xlu0 %1798
        %v1800 = vmul.f32 %v1796, %v1608
        %v1801 = vmul.f32 %v1799, %v1608
        %v1802 = vsub.f32 %v1792, %v1800
        %v1803 = vsub.f32 %v1793, %v1801
        %v1804 = vmul.f32 %v1802, %v1802
        %v1805 = vmul.f32 %v1803, %v1803
        %v1806 = vsel %vm431, %v1804, 0.0
        %1807 = vadd.xlane.f32.xlu0 %v1806
        %v1808 = vpop.xlane.xlu0 %1807
        %v1809 = vsel %vm431, %v1805, 0.0
        %1810 = vadd.xlane.f32.xlu0 %v1809
        %v1811 = vpop.xlane.xlu0 %1810
        %v1812 = vmul.f32 %v1808, %v1608
        %v1813 = vmul.f32 %v1811, %v1608
        %v1814 = vadd.f32 %v1812, 1e-05
        %v1815 = vadd.f32 %v1813, 1e-05
        %v1816 = vrsqrt.pop %v1814
        %v1817 = vrsqrt.pop %v1815
        %v1818 = vmul.f32 %v1802, %v1816
        %v1819 = vmul.f32 %v1803, %v1817
        %v1820 = vlaneseq
        %v1821 = vshrl.u32 %v1820, 7
        %v1822 = vsub.s32 7, %v1821
        %v1823 = vrot.slane %v411, %v1822
        %v1824 = vmul.f32 %v1818, %v1823
        %v1825 = vmul.f32 %v1819, %v1823
        %v1826 = vlaneseq
        %v1827 = vshrl.u32 %v1826, 7
        %v1828 = vsub.s32 0, %v1827
        %v1829 = vrot.slane %v412, %v1828
        %v1830 = vadd.f32 %v1824, %v1829
        %v1831 = vadd.f32 %v1825, %v1829
        %1832 = vst.msk [vmem:[#allocation2] sm:$0xff] %vm431, %v1830
        %1833 = vst.msk [vmem:[#allocation2 + $0x8] sm:$0xff] %vm431, %v1831
        // Predicated region
        $region53: #{tpu_custom_call.1} parent=47 // pred_check
          %p1834 = pneg %p231
        $region54: #{tpu_custom_call.1} parent=47 // pred_check_branch
          %1836 = sbr.rel (%p1834) target = $region56
        $region55: #{tpu_custom_call.1} parent=47 // pred_region
          %s1837 = smul.u32 2, %s23
          %s1839 = ssub.s32 256, 256
          %1840 = vsyncadd [#allocation3], %s1839
          %s1841 = smul.addr %s1837, 128
          %s1842 = scalar_lea.hbm %s7, %s1841
          %s1843 = sshll.u32 [#allocation2], 4
          %s1844 = int_to_ptr.vmem [resolvable:$true] %s1843
          %1849 = dma.vmem_to_hbm [thread:$0]  %s1844, 256, %s1842, [#allocation3], 128, 128, 8
        $region56: #{tpu_custom_call.1} parent=47 // pred_fallthru
          _
        // Predicated region
        $region57: #{tpu_custom_call.1} parent=47 // pred_check
          %p1850 = pneg %p231
        $region58: #{tpu_custom_call.1} parent=47 // pred_check_branch
          %1852 = sbr.rel (%p1850) target = $region60
        $region59: #{tpu_custom_call.1} parent=47 // pred_region
          %1853 = dma.done [#allocation3], 256
        $region60: #{tpu_custom_call.1} parent=47 // pred_fallthru
          _
      $region48: #{tpu_custom_call.1} parent=5 // pred_fallthru
        _
      %p1854 = scmp.le.s32.totalorder 2, %s14
      // Predicated region
      $region61: #{tpu_custom_call.1} parent=5 // pred_check
        %p1855 = pneg %p1854
      $region62: #{tpu_custom_call.1} parent=5 // pred_check_branch
        %1857 = sbr.rel (%p1855) target = $region64
      $region63: #{tpu_custom_call.1} parent=5 // pred_region
        %s1858 = ssub.s32 %s14, 2
      $region64: #{tpu_custom_call.1} parent=5 // pred_fallthru
        _
    $region6: #{tpu_custom_call.1} parent=1 // loop_footer
      %s18 = sadd.s32 1, %s14
    $region7: #{tpu_custom_call.1} parent=1 // loop_footer_branch
      %13 = sbr.rel target = $region3
    $region8: #{tpu_custom_call.1} parent=1 // loop_exit
      _
    %1859 = vsyncpa [#allocation3], 1
    %s1860 = scalar_lea.sflag [#allocation3], 1
    %1861 = vsyncpa %s1860, 1

</llo_original>
